<compile_context>
chip_gen: v5e
topology: v5e:2x2
jax: 0.10.0
libtpu: 0.0.40
codegen_flags: <defaults>
</compile_context>

<pallas_src>
import functools

import numpy as np

import jax
import jax.numpy as jnp
from jax.experimental import pallas as pl
from jax.experimental.pallas import tpu as pltpu


# ----------------------------------------------------------------------------
# Config / constants
# ----------------------------------------------------------------------------

CUBIFY_THRESH = 0.2
VOXEL_SIZE = 4            # cfg.MODEL.VOXEL_HEAD.VOXEL_SIZE (toy)
FEAT_DIMS = (8, 16)       # backbone feature dims (toy)
MESH_HIDDEN = 32          # mesh refinement hidden dim (toy)
K1_PAD = 32               # conv1 im2col contraction dim (3*3*3 = 27 padded to 32)
MESH_K_PAD = 32           # mesh bottleneck contraction dim (8+16+3 = 27 padded to 32)
VERTS_PER_MESH = 4        # dummy mesh

# get_blender_intrinsic_matrix()
BLENDER_K_NP = np.array(
    [
        [2.1875, 0.0, 0.0, 0.0],
        [0.0, 2.1875, 0.0, 0.0],
        [0.0, 0.0, -1.002002, -0.2002002],
        [0.0, 0.0, -1.0, 0.0],
    ],
    dtype=np.float32,
)

DUMMY_FACES_NP = np.array(
    [[0, 1, 2], [0, 2, 3], [0, 3, 1], [1, 3, 2]], dtype=np.int32
)


# ----------------------------------------------------------------------------
# Static constant builders (numpy -> constant-folded under jit)
# ----------------------------------------------------------------------------

def _center_mask_t_np(n_mesh, v):
    """(V, N*V*V) mask of the V//2-cube center region, column = n*V*V + h*V + w."""
    start, stop = v // 4, v // 4 + v // 2
    inside = lambda i: start <= i < stop
    m = np.zeros((v, n_mesh * v * v), np.float32)
    for d in range(v):
        if not inside(d):
            continue
        for n in range(n_mesh):
            for h in range(v):
                for w in range(v):
                    if inside(h) and inside(w):
                        m[d, n * v * v + h * v + w] = 1.0
    return m


def _membership_t_np(n_mesh, cols_per_mesh):
    """(n_mesh, n_mesh*cols_per_mesh) 0/1 mesh-membership matrix (row = mesh)."""
    m = np.zeros((n_mesh, n_mesh * cols_per_mesh), np.float32)
    for n in range(n_mesh):
        m[n, n * cols_per_mesh:(n + 1) * cols_per_mesh] = 1.0
    return m


def _conv2_gather_packed_np(n_mesh, h1, w1):
    """Packed one-hot gather (M1, 9*M2) for a 3x3 stride-2 'same' conv.

    g[c, p*M2 + r] = 1 iff tap p=(ki,kj) of conv2 output position r reads conv1
    output position c (same batch element); padded taps are all-zero columns.
    """
    h2, w2 = h1 // 2, w1 // 2
    m1, m2 = n_mesh * h1 * w1, n_mesh * h2 * w2
    g = np.zeros((m1, 9 * m2), np.float32)
    for ki in range(3):
        for kj in range(3):
            p = ki * 3 + kj
            for n in range(n_mesh):
                for oh in range(h2):
                    for ow in range(w2):
                        ih, iw = 2 * oh + ki - 1, 2 * ow + kj - 1
                        if 0 <= ih < h1 and 0 <= iw < w1:
                            r = n * h2 * w2 + oh * w2 + ow
                            c = n * h1 * w1 + ih * w1 + iw
                            g[c, p * m2 + r] = 1.0
    return g


def _block_diag_adjacency_np(faces, n_mesh, n_verts):
    """Undirected adjacency from faces (GraphConv neighbor sum), block-diag over batch."""
    a = np.zeros((n_verts, n_verts), np.float32)
    for i, j in [(0, 1), (1, 2), (0, 2)]:
        a[faces[:, i], faces[:, j]] = 1.0
        a[faces[:, j], faces[:, i]] = 1.0
    return np.kron(np.eye(n_mesh, dtype=np.float32), a)


# ----------------------------------------------------------------------------
# The single fused Pallas kernel
# ----------------------------------------------------------------------------

def _vox_mesh_kernel(
    # backbone + voxel head
    cols1t_ref, w1t_ref, b1_ref,
    g2p_ref, w2cat_ref, b2_ref,
    wvt_ref, bv_ref,
    # cubify preprocessing constants
    cmask_ref, membt_ref,
    # mesh refinement
    verts_ref, vbase_ref, pa_ref, pb_ref, adj_ref,
    wbp_ref, bb_ref, w0_ref, w1g_ref, bg_ref, w2g_ref, w3g_ref, bo_ref,
    # outputs
    scores_ref, probs_ref, counts_ref, verts_out_ref,
    *, n_mesh, h1, w1, h2, w2, thresh, eps,
):
    f32 = jnp.float32
    hw2 = h2 * w2
    m2 = n_mesh * hw2

    # ---- conv1: relu(W1 @ cols1^T)   (C1, 32) @ (32, M1) -> (C1, M1), lane-dense M1.
    f1t = jnp.dot(w1t_ref[...], cols1t_ref[...], preferred_element_type=f32)
    f1t = jnp.maximum(f1t + b1_ref[...], 0.0)                        # (C1, M1)

    # ---- conv2 (3x3 stride-2 'same') as TWO MXU matmuls instead of 18:
    #   taps_wide = f1^T @ G_packed       -> (C1, 9*M2)
    #   f2^T      = W2_cat @ stack(taps)  -> (C2, M2)
    # The 9 tap slices are full-sublane-group copies into the (9*C1, M2) stack,
    # so the concat is just vreg copies.
    g2 = g2p_ref[...].astype(f32)                                    # bf16 0/1 -> f32 (exact)
    taps_wide = jnp.dot(f1t, g2, preferred_element_type=f32)         # (C1, 9*M2)
    taps = jnp.concatenate(
        [taps_wide[:, p * m2:(p + 1) * m2] for p in range(9)], axis=0)  # (9*C1, M2)
    f2t = jnp.dot(w2cat_ref[...], taps, preferred_element_type=f32) + b2_ref[...]
    f2t = jnp.maximum(f2t, 0.0)                                      # (C2, M2)

    # ---- voxel head (1x1 conv): (V, C2) @ (C2, M2)
    scorest = jnp.dot(wvt_ref[...], f2t, preferred_element_type=f32) + bv_ref[...]

    # ---- cubify preprocessing: sigmoid / threshold / per-mesh count / center fill.
    probs = jax.nn.sigmoid(scorest)                                  # (V, M2)
    active = (probs > thresh).astype(f32)
    col_sums = jnp.sum(active, axis=0, keepdims=True)                # (1, M2)
    membt = membt_ref[...]                                           # (n_mesh, M2)
    nt = (((1,), (1,)), ((), ()))
    counts_row = jax.lax.dot_general(col_sums, membt, nt,
                                     preferred_element_type=f32)     # (1, n_mesh)
    counts_ref[...] = counts_row.astype(jnp.int32)                   # exact at toy counts
    empty = (counts_row == 0.0).astype(f32)                          # (1, n_mesh)
    empty_cols = jnp.dot(empty, membt, preferred_element_type=f32)   # (1, M2)
    fill = (cmask_ref[...] * empty_cols) > 0.5
    probs_filled = jnp.where(fill, 1.0, probs)

    # outputs in consumer layout (N, V, H2*W2): one slice-store per mesh.
    for n in range(n_mesh):
        scores_ref[n] = scorest[:, n * hw2:(n + 1) * hw2]
        probs_ref[n] = probs_filled[:, n * hw2:(n + 1) * hw2]

    # ---- mesh refinement (dummy-mesh path): project -> vert_align -> graph convs.
    verts = verts_ref[...]                                           # (MV, 3)
    # project_verts: cam = P @ [v; 1] folded into verts @ P[:, :3]^T + P[:, 3].
    cam = jnp.dot(verts, pa_ref[...], preferred_element_type=f32) + pb_ref[...]
    wc = cam[:, 3:4]
    wc = jnp.where(jnp.abs(wc) < eps, jnp.where(wc < 0.0, -eps, eps), wc)
    x_ndc = cam[:, 0:1] / wc
    y_ndc = cam[:, 1:2] / wc

    # TODO(synk): true vert_align is a bilinear grid_sample; nearest-neighbor here.
    def to_index(ndc, extent):
        pix = (ndc + 1.0) * 0.5 * (extent - 1)
        pix = jnp.clip(jnp.floor(pix + 0.5), 0.0, extent - 1)
        return pix.astype(jnp.int32)

    col1 = vbase_ref[:, 0:1] + to_index(y_ndc, h1) * w1 + to_index(x_ndc, w1)
    col2 = vbase_ref[:, 1:2] + to_index(y_ndc, h2) * w2 + to_index(x_ndc, w2)

    mv = verts.shape[0]
    m1 = f1t.shape[1]
    # one-hot selection matrices built from iota compares -> gather via MXU matmul
    sel1 = (jax.lax.broadcasted_iota(jnp.int32, (mv, m1), 1) == col1).astype(f32)
    sel2 = (jax.lax.broadcasted_iota(jnp.int32, (mv, m2), 1) == col2).astype(f32)
    samp1 = jax.lax.dot_general(sel1, f1t, nt, preferred_element_type=f32)   # (MV, C1)
    samp2 = jax.lax.dot_general(sel2, f2t, nt, preferred_element_type=f32)   # (MV, C2)

    k_used = samp1.shape[1] + samp2.shape[1] + verts.shape[1]
    feats = jnp.concatenate(
        [samp1, samp2, verts, jnp.zeros((mv, MESH_K_PAD - k_used), f32)], axis=1)

    adj = adj_ref[...]                                               # (MV, MV)
    # bottleneck
    h = jnp.dot(feats, wbp_ref[...], preferred_element_type=f32) + bb_ref[...]
    h = jnp.maximum(h, 0.0)
    # graph conv 1:  h @ w0 + (A @ h) @ w1   (separate matmuls: no lane-unaligned slices)
    nbr = jnp.dot(adj, h, preferred_element_type=f32)
    h = (jnp.dot(h, w0_ref[...], preferred_element_type=f32)
         + jnp.dot(nbr, w1g_ref[...], preferred_element_type=f32)
         + bg_ref[...])
    h = jnp.maximum(h, 0.0)
    # graph conv 2 (vertex offset head, output dim 3) + tanh
    nbr = jnp.dot(adj, h, preferred_element_type=f32)
    off = (jnp.dot(h, w2g_ref[...], preferred_element_type=f32)
           + jnp.dot(nbr, w3g_ref[...], preferred_element_type=f32)
           + bo_ref[...])
    verts_out_ref[...] = verts + jnp.tanh(off)


# ----------------------------------------------------------------------------
# JAX glue (input-dependent preprocessing only)
# ----------------------------------------------------------------------------

def _im2col_stride2_same(x_nhwc, k=3):
    """3x3 stride-2 'same' im2col (depends only on the raw input image)."""
    n, h, w, c = x_nhwc.shape
    pad = k // 2
    xp = jnp.pad(x_nhwc, ((0, 0), (pad, pad), (pad, pad), (0, 0)))
    ho, wo = h // 2, w // 2
    patches = []
    for i in range(k):
        for j in range(k):
            patches.append(xp[:, i:i + 2 * ho:2, j:j + 2 * wo:2, :])
    cols = jnp.concatenate(patches, axis=-1)           # (N, Ho, Wo, k*k*C)
    return cols.reshape(n * ho * wo, k * k * c)


# ----------------------------------------------------------------------------
# Parameters (deterministic, synthetic; PyTorch-style layouts + one-time packing)
# ----------------------------------------------------------------------------

def init_params(key):
    ks = jax.random.split(key, 8)
    s = 0.1
    h = MESH_HIDDEN
    feat = sum(FEAT_DIMS) + 3   # sampled features + xyz
    return {
        # backbone: feat_dims = [8, 16]
        "conv1_w": s * jax.random.normal(ks[0], (3, 3, 3, FEAT_DIMS[0]), jnp.float32),
        "conv1_b": jnp.zeros((FEAT_DIMS[0],), jnp.float32),
        "conv2_w": s * jax.random.normal(ks[1], (3, 3, FEAT_DIMS[0], FEAT_DIMS[1]), jnp.float32),
        "conv2_b": jnp.zeros((FEAT_DIMS[1],), jnp.float32),
        # voxel head predictor (1x1 conv: last-backbone-channels -> V depth slices)
        "vox_w": s * jax.random.normal(ks[2], (FEAT_DIMS[1], VOXEL_SIZE), jnp.float32),
        "vox_b": jnp.zeros((VOXEL_SIZE,), jnp.float32),
        # mesh refinement head
        "mesh_wb": s * jax.random.normal(ks[3], (feat, h), jnp.float32),
        "mesh_bb": jnp.zeros((h,), jnp.float32),
        "mesh_w0": s * jax.random.normal(ks[4], (h, h), jnp.float32),
        "mesh_w1": s * jax.random.normal(ks[5], (h, h), jnp.float32),
        "mesh_bg": jnp.zeros((h,), jnp.float32),
        "mesh_w2": s * jax.random.normal(ks[6], (h, 3), jnp.float32),
        "mesh_w3": s * jax.random.normal(ks[7], (h, 3), jnp.float32),
        "mesh_bo": jnp.zeros((3,), jnp.float32),
    }


def pack_params(p):
    """One-time repack into kernel-ready (transposed / K-padded / concatenated) layouts."""
    c1 = FEAT_DIMS[0]
    k1 = p["conv1_w"].shape[0] * p["conv1_w"].shape[1] * p["conv1_w"].shape[2]
    w1 = p["conv1_w"].reshape(k1, c1)
    w1 = jnp.pad(w1, ((0, K1_PAD - k1), (0, 0)))                      # (32, 8)
    w2cat = jnp.concatenate(
        [p["conv2_w"][ki, kj].T for ki in range(3) for kj in range(3)],
        axis=1)                                                       # (C2, 9*C1) = (16, 72)
    feat = p["mesh_wb"].shape[0]
    wbp = jnp.pad(p["mesh_wb"], ((0, MESH_K_PAD - feat), (0, 0)))     # (32, 32)
    return {
        "w1t": w1.T,                                                  # (8, 32)
        "b1c": p["conv1_b"].reshape(-1, 1),                           # (8, 1)
        "w2cat": w2cat,                                               # (16, 72)
        "b2c": p["conv2_b"].reshape(-1, 1),                           # (16, 1)
        "wvt": p["vox_w"].T,                                          # (4, 16)
        "bvc": p["vox_b"].reshape(-1, 1),                             # (4, 1)
        "mesh_wbp": wbp,                                              # (32, 32)
        "mesh_bb": p["mesh_bb"].reshape(1, -1),                       # (1, 32)
        "mesh_w0": p["mesh_w0"],                                      # (32, 32)
        "mesh_w1": p["mesh_w1"],                                      # (32, 32)
        "mesh_bg": p["mesh_bg"].reshape(1, -1),                       # (1, 32)
        "mesh_w2": p["mesh_w2"],                                      # (32, 3)
        "mesh_w3": p["mesh_w3"],                                      # (32, 3)
        "mesh_bo": p["mesh_bo"].reshape(1, -1),                       # (1, 3)
    }


# ----------------------------------------------------------------------------
# VoxMeshHead forward (fully jit'ed, single pallas_call)
# ----------------------------------------------------------------------------

@jax.jit
def vox_mesh_head_forward(imgs_nchw, packed, mesh_key):
    n, _, h, w = imgs_nchw.shape
    v = VOXEL_SIZE
    h1, w1 = h // 2, w // 2          # conv1 output spatial
    h2, w2 = h1 // 2, w1 // 2        # conv2 / voxel-head output spatial
    assert h2 == v and w2 == v, "toy config assumes voxel grid == conv2 spatial"
    mv = n * VERTS_PER_MESH

    x = jnp.transpose(imgs_nchw, (0, 2, 3, 1))                       # NCHW -> NHWC

    # conv1 im2col (input-dependent preprocessing; fuses into a couple of XLA ops)
    cols1 = _im2col_stride2_same(x, k=3)                             # (N*h1*w1, 27)
    cols1 = jnp.pad(cols1, ((0, 0), (0, K1_PAD - cols1.shape[1])))   # K 27 -> 32
    cols1t = cols1.T                                                 # (32, M1) lane-dense M1

    # static constants (numpy -> constant-folded under jit); big 0/1 gather kept bf16.
    g2p = jnp.asarray(_conv2_gather_packed_np(n, h1, w1), dtype=jnp.bfloat16)  # (128, 288)
    cmask = jnp.asarray(_center_mask_t_np(n, v))                     # (V, M2)
    membt = jnp.asarray(_membership_t_np(n, h2 * w2))                # (N, M2)
    adj = jnp.asarray(_block_diag_adjacency_np(DUMMY_FACES_NP, n, VERTS_PER_MESH))
    pa = jnp.asarray(BLENDER_K_NP[:, :3].T)                          # (3, 4)
    pb = jnp.asarray(BLENDER_K_NP[:, 3][None, :])                    # (1, 4)
    vb = np.zeros((mv, 2), np.int32)
    vb[:, 0] = (np.arange(mv) // VERTS_PER_MESH) * (h1 * w1)         # flat base into f1
    vb[:, 1] = (np.arange(mv) // VERTS_PER_MESH) * (h2 * w2)         # flat base into f2
    vbase = jnp.asarray(vb)

    # TODO(synk): cubify() -> Meshes, _add_dummies, voxel_to_world are dynamic-topology
    # mesh ops with no Pallas equivalent; refinement below uses the fixed dummy mesh.
    verts = jax.random.normal(mesh_key, (mv, 3), jnp.float32)        # torch.randn(N, 4, 3)
    faces = jnp.broadcast_to(jnp.asarray(DUMMY_FACES_NP)[None], (n, VERTS_PER_MESH, 3))

    kernel = functools.partial(
        _vox_mesh_kernel, n_mesh=n, h1=h1, w1=w1, h2=h2, w2=w2,
        thresh=CUBIFY_THRESH, eps=1e-4)
    vmem = pl.BlockSpec(memory_space=pltpu.MemorySpace.VMEM)
    scores3, probs3, counts2, new_verts = pl.pallas_call(
        kernel,
        in_specs=[vmem] * 23,
        out_specs=(vmem, vmem, vmem, vmem),
        out_shape=(
            jax.ShapeDtypeStruct((n, v, h2 * w2), jnp.float32),   # voxel scores (N, V, H*W)
            jax.ShapeDtypeStruct((n, v, h2 * w2), jnp.float32),   # cubify-ready voxel probs
            jax.ShapeDtypeStruct((1, n), jnp.int32),              # active voxels per mesh
            jax.ShapeDtypeStruct((mv, 3), jnp.float32),           # refined dummy verts
        ),
    )(cols1t, packed["w1t"], packed["b1c"],
      g2p, packed["w2cat"], packed["b2c"],
      packed["wvt"], packed["bvc"],
      cmask, membt,
      verts, vbase, pa, pb, adj,
      packed["mesh_wbp"], packed["mesh_bb"],
      packed["mesh_w0"], packed["mesh_w1"], packed["mesh_bg"],
      packed["mesh_w2"], packed["mesh_w3"], packed["mesh_bo"])

    voxel_scores = scores3.reshape(n, v, h2, w2)                     # (N, D, H, W)
    voxel_probs = probs3.reshape(n, v, h2, w2)
    voxels_per_mesh = counts2[0]
    refined_verts = new_verts.reshape(n, VERTS_PER_MESH, 3)
    return voxel_scores, voxel_probs, voxels_per_mesh, refined_verts, faces


# ----------------------------------------------------------------------------
# Main
# ----------------------------------------------------------------------------

if __name__ == "__main__":
    key = jax.random.PRNGKey(0)
    k_img, k_mesh, k_par = jax.random.split(key, 3)

    imgs = jax.random.normal(k_img, (2, 3, 16, 16), jnp.float32)   # PyTorch NCHW
    params = init_params(k_par)
    packed = pack_params(params)                                   # one-time weight packing

    outs = vox_mesh_head_forward(imgs, packed, k_mesh)
    jax.block_until_ready(outs)

    voxel_scores, voxel_probs, counts, refined_verts, faces = outs
    assert voxel_scores.shape == (2, VOXEL_SIZE, VOXEL_SIZE, VOXEL_SIZE)
    assert voxel_probs.shape == (2, VOXEL_SIZE, VOXEL_SIZE, VOXEL_SIZE)
    assert counts.shape == (2,)
    assert refined_verts.shape == (2, VERTS_PER_MESH, 3)
    assert faces.shape == (2, VERTS_PER_MESH, 3)
    print("KERNEL_OK")
</pallas_src>

<mosaic_0001>
module attributes {stable_mosaic.version = 11 : i64} {
  func.func @_vox_mesh_kernel(%arg0: memref<32x128xf32, #tpu.memory_space<vmem>>, %arg1: memref<8x32xf32, #tpu.memory_space<vmem>>, %arg2: memref<8x1xf32, #tpu.memory_space<vmem>>, %arg3: memref<128x288xbf16, #tpu.memory_space<vmem>>, %arg4: memref<16x72xf32, #tpu.memory_space<vmem>>, %arg5: memref<16x1xf32, #tpu.memory_space<vmem>>, %arg6: memref<4x16xf32, #tpu.memory_space<vmem>>, %arg7: memref<4x1xf32, #tpu.memory_space<vmem>>, %arg8: memref<4x32xf32, #tpu.memory_space<vmem>>, %arg9: memref<2x32xf32, #tpu.memory_space<vmem>>, %arg10: memref<8x3xf32, #tpu.memory_space<vmem>>, %arg11: memref<8x2xi32, #tpu.memory_space<vmem>>, %arg12: memref<3x4xf32, #tpu.memory_space<vmem>>, %arg13: memref<1x4xf32, #tpu.memory_space<vmem>>, %arg14: memref<8x8xf32, #tpu.memory_space<vmem>>, %arg15: memref<32x32xf32, #tpu.memory_space<vmem>>, %arg16: memref<1x32xf32, #tpu.memory_space<vmem>>, %arg17: memref<32x32xf32, #tpu.memory_space<vmem>>, %arg18: memref<32x32xf32, #tpu.memory_space<vmem>>, %arg19: memref<1x32xf32, #tpu.memory_space<vmem>>, %arg20: memref<32x3xf32, #tpu.memory_space<vmem>>, %arg21: memref<32x3xf32, #tpu.memory_space<vmem>>, %arg22: memref<1x3xf32, #tpu.memory_space<vmem>>, %arg23: memref<2x4x16xf32, #tpu.memory_space<vmem>>, %arg24: memref<2x4x16xf32, #tpu.memory_space<vmem>>, %arg25: memref<1x2xi32, #tpu.memory_space<vmem>>, %arg26: memref<8x3xf32, #tpu.memory_space<vmem>>) attributes {dimension_semantics = [], scalar_prefetch = 0 : i64, scratch_operands = 0 : i64, tpu.core_type = #tpu.core_type<tc>} {
    %c0 = arith.constant 0 : index
    %c0_0 = arith.constant 0 : index
    %0 = vector.load %arg1[%c0, %c0_0] : memref<8x32xf32, #tpu.memory_space<vmem>>, vector<8x32xf32>
    %c0_1 = arith.constant 0 : index
    %c0_2 = arith.constant 0 : index
    %1 = vector.load %arg0[%c0_1, %c0_2] : memref<32x128xf32, #tpu.memory_space<vmem>>, vector<32x128xf32>
    %cst = arith.constant dense<0.000000e+00> : vector<8x128xf32>
    %2 = tpu.matmul %0, %1, %cst {dimension_numbers = #tpu.dot_dimension_numbers<[1], [0], [0], [1], [0, 0, 1, 1], [], []>} : vector<8x32xf32>, vector<32x128xf32>, vector<8x128xf32> -> vector<8x128xf32>
    %c0_3 = arith.constant 0 : index
    %c0_4 = arith.constant 0 : index
    %3 = vector.load %arg2[%c0_3, %c0_4] : memref<8x1xf32, #tpu.memory_space<vmem>>, vector<8x1xf32>
    %4 = vector.broadcast %3 : vector<8x1xf32> to vector<8x128xf32>
    %5 = arith.addf %2, %4 : vector<8x128xf32>
    %cst_5 = arith.constant 0.000000e+00 : f32
    %6 = vector.broadcast %cst_5 : f32 to vector<8x128xf32>
    %7 = arith.maximumf %5, %6 : vector<8x128xf32>
    %c0_6 = arith.constant 0 : index
    %c0_7 = arith.constant 0 : index
    %8 = vector.load %arg3[%c0_6, %c0_7] : memref<128x288xbf16, #tpu.memory_space<vmem>>, vector<128x288xbf16>
    %9 = arith.extf %8 : vector<128x288xbf16> to vector<128x288xf32>
    %cst_8 = arith.constant dense<0.000000e+00> : vector<8x288xf32>
    %10 = tpu.matmul %7, %9, %cst_8 {dimension_numbers = #tpu.dot_dimension_numbers<[1], [0], [0], [1], [0, 0, 1, 1], [], []>} : vector<8x128xf32>, vector<128x288xf32>, vector<8x288xf32> -> vector<8x288xf32>
    %11 = vector.extract_strided_slice %10 {offsets = [0, 0], sizes = [8, 32], strides = [1, 1]} : vector<8x288xf32> to vector<8x32xf32>
    %12 = vector.extract_strided_slice %10 {offsets = [0, 32], sizes = [8, 32], strides = [1, 1]} : vector<8x288xf32> to vector<8x32xf32>
    %13 = vector.extract_strided_slice %10 {offsets = [0, 64], sizes = [8, 32], strides = [1, 1]} : vector<8x288xf32> to vector<8x32xf32>
    %14 = vector.extract_strided_slice %10 {offsets = [0, 96], sizes = [8, 32], strides = [1, 1]} : vector<8x288xf32> to vector<8x32xf32>
    %15 = vector.extract_strided_slice %10 {offsets = [0, 128], sizes = [8, 32], strides = [1, 1]} : vector<8x288xf32> to vector<8x32xf32>
    %16 = vector.extract_strided_slice %10 {offsets = [0, 160], sizes = [8, 32], strides = [1, 1]} : vector<8x288xf32> to vector<8x32xf32>
    %17 = vector.extract_strided_slice %10 {offsets = [0, 192], sizes = [8, 32], strides = [1, 1]} : vector<8x288xf32> to vector<8x32xf32>
    %18 = vector.extract_strided_slice %10 {offsets = [0, 224], sizes = [8, 32], strides = [1, 1]} : vector<8x288xf32> to vector<8x32xf32>
    %19 = vector.extract_strided_slice %10 {offsets = [0, 256], sizes = [8, 32], strides = [1, 1]} : vector<8x288xf32> to vector<8x32xf32>
    %20 = tpu.concatenate %11, %12, %13, %14, %15, %16, %17, %18, %19 in 0 : vector<8x32xf32>, vector<8x32xf32>, vector<8x32xf32>, vector<8x32xf32>, vector<8x32xf32>, vector<8x32xf32>, vector<8x32xf32>, vector<8x32xf32>, vector<8x32xf32> -> vector<72x32xf32>
    %c0_9 = arith.constant 0 : index
    %c0_10 = arith.constant 0 : index
    %21 = vector.load %arg4[%c0_9, %c0_10] : memref<16x72xf32, #tpu.memory_space<vmem>>, vector<16x72xf32>
    %cst_11 = arith.constant dense<0.000000e+00> : vector<16x32xf32>
    %22 = tpu.matmul %21, %20, %cst_11 {dimension_numbers = #tpu.dot_dimension_numbers<[1], [0], [0], [1], [0, 0, 1, 1], [], []>} : vector<16x72xf32>, vector<72x32xf32>, vector<16x32xf32> -> vector<16x32xf32>
    %c0_12 = arith.constant 0 : index
    %c0_13 = arith.constant 0 : index
    %23 = vector.load %arg5[%c0_12, %c0_13] : memref<16x1xf32, #tpu.memory_space<vmem>>, vector<16x1xf32>
    %24 = vector.broadcast %23 : vector<16x1xf32> to vector<16x32xf32>
    %25 = arith.addf %22, %24 : vector<16x32xf32>
    %cst_14 = arith.constant 0.000000e+00 : f32
    %26 = vector.broadcast %cst_14 : f32 to vector<16x32xf32>
    %27 = arith.maximumf %25, %26 : vector<16x32xf32>
    %c0_15 = arith.constant 0 : index
    %c0_16 = arith.constant 0 : index
    %28 = vector.load %arg6[%c0_15, %c0_16] : memref<4x16xf32, #tpu.memory_space<vmem>>, vector<4x16xf32>
    %cst_17 = arith.constant dense<0.000000e+00> : vector<4x32xf32>
    %29 = tpu.matmul %28, %27, %cst_17 {dimension_numbers = #tpu.dot_dimension_numbers<[1], [0], [0], [1], [0, 0, 1, 1], [], []>} : vector<4x16xf32>, vector<16x32xf32>, vector<4x32xf32> -> vector<4x32xf32>
    %c0_18 = arith.constant 0 : index
    %c0_19 = arith.constant 0 : index
    %30 = vector.load %arg7[%c0_18, %c0_19] : memref<4x1xf32, #tpu.memory_space<vmem>>, vector<4x1xf32>
    %31 = vector.broadcast %30 : vector<4x1xf32> to vector<4x32xf32>
    %32 = arith.addf %29, %31 : vector<4x32xf32>
    %33 = arith.negf %32 : vector<4x32xf32>
    %34 = math.exp %33 : vector<4x32xf32>
    %cst_20 = arith.constant 1.000000e+00 : f32
    %35 = vector.broadcast %cst_20 : f32 to vector<4x32xf32>
    %36 = arith.addf %35, %34 : vector<4x32xf32>
    %37 = arith.divf %35, %36 : vector<4x32xf32>
    %cst_21 = arith.constant 2.000000e-01 : f32
    %38 = vector.broadcast %cst_21 : f32 to vector<4x32xf32>
    %39 = arith.cmpf ogt, %37, %38 : vector<4x32xf32>
    %40 = arith.extui %39 : vector<4x32xi1> to vector<4x32xi32>
    %41 = arith.sitofp %40 : vector<4x32xi32> to vector<4x32xf32>
    %cst_22 = arith.constant dense<0.000000e+00> : vector<32xf32>
    %42 = vector.multi_reduction <add>, %41, %cst_22 [0] : vector<4x32xf32> to vector<32xf32>
    %43 = vector.shape_cast %42 : vector<32xf32> to vector<1x32xf32>
    %c0_23 = arith.constant 0 : index
    %c0_24 = arith.constant 0 : index
    %44 = vector.load %arg9[%c0_23, %c0_24] : memref<2x32xf32, #tpu.memory_space<vmem>>, vector<2x32xf32>
    %cst_25 = arith.constant dense<0.000000e+00> : vector<1x2xf32>
    %45 = tpu.matmul %43, %44, %cst_25 {dimension_numbers = #tpu.dot_dimension_numbers<[1], [1], [0], [0], [0, 0, 1, 0], [], []>} : vector<1x32xf32>, vector<2x32xf32>, vector<1x2xf32> -> vector<1x2xf32>
    %46 = arith.fptosi %45 : vector<1x2xf32> to vector<1x2xi32>
    %c0_26 = arith.constant 0 : index
    %c0_27 = arith.constant 0 : index
    %47 = vector.load %arg25[%c0_26, %c0_27] : memref<1x2xi32, #tpu.memory_space<vmem>>, vector<1x2xi32>
    tpu.vector_store %arg25[%c0_26, %c0_27], %46 {strides = array<i32>} : memref<1x2xi32, #tpu.memory_space<vmem>>, vector<1x2xi32>,
    %cst_28 = arith.constant 0.000000e+00 : f32
    %48 = vector.broadcast %cst_28 : f32 to vector<1x2xf32>
    %49 = arith.cmpf oeq, %45, %48 : vector<1x2xf32>
    %50 = arith.extui %49 : vector<1x2xi1> to vector<1x2xi32>
    %51 = arith.sitofp %50 : vector<1x2xi32> to vector<1x2xf32>
    %cst_29 = arith.constant dense<0.000000e+00> : vector<1x32xf32>
    %52 = tpu.matmul %51, %44, %cst_29 {dimension_numbers = #tpu.dot_dimension_numbers<[1], [0], [0], [1], [0, 0, 1, 1], [], []>} : vector<1x2xf32>, vector<2x32xf32>, vector<1x32xf32> -> vector<1x32xf32>
    %c0_30 = arith.constant 0 : index
    %c0_31 = arith.constant 0 : index
    %53 = vector.load %arg8[%c0_30, %c0_31] : memref<4x32xf32, #tpu.memory_space<vmem>>, vector<4x32xf32>
    %54 = vector.broadcast %52 : vector<1x32xf32> to vector<4x32xf32>
    %55 = arith.mulf %53, %54 : vector<4x32xf32>
    %cst_32 = arith.constant 5.000000e-01 : f32
    %56 = vector.broadcast %cst_32 : f32 to vector<4x32xf32>
    %57 = arith.cmpf ogt, %55, %56 : vector<4x32xf32>
    %cst_33 = arith.constant 1.000000e+00 : f32
    %58 = vector.broadcast %cst_33 : f32 to vector<4x32xf32>
    %59 = arith.select %57, %58, %37 : vector<4x32xi1>, vector<4x32xf32>
    %60 = vector.extract_strided_slice %32 {offsets = [0, 0], sizes = [4, 16], strides = [1, 1]} : vector<4x32xf32> to vector<4x16xf32>
    %c0_34 = arith.constant 0 : index
    %c0_35 = arith.constant 0 : index
    %c0_36 = arith.constant 0 : index
    %61 = vector.load %arg23[%c0_34, %c0_35, %c0_36] : memref<2x4x16xf32, #tpu.memory_space<vmem>>, vector<1x4x16xf32>
    %62 = vector.shape_cast %61 : vector<1x4x16xf32> to vector<4x16xf32>
    %63 = vector.shape_cast %60 : vector<4x16xf32> to vector<1x4x16xf32>
    tpu.vector_store %arg23[%c0_34, %c0_35, %c0_36], %63 {strides = array<i32>} : memref<2x4x16xf32, #tpu.memory_space<vmem>>, vector<1x4x16xf32>,
    %64 = vector.extract_strided_slice %59 {offsets = [0, 0], sizes = [4, 16], strides = [1, 1]} : vector<4x32xf32> to vector<4x16xf32>
    %c0_37 = arith.constant 0 : index
    %c0_38 = arith.constant 0 : index
    %c0_39 = arith.constant 0 : index
    %65 = vector.load %arg24[%c0_37, %c0_38, %c0_39] : memref<2x4x16xf32, #tpu.memory_space<vmem>>, vector<1x4x16xf32>
    %66 = vector.shape_cast %65 : vector<1x4x16xf32> to vector<4x16xf32>
    %67 = vector.shape_cast %64 : vector<4x16xf32> to vector<1x4x16xf32>
    tpu.vector_store %arg24[%c0_37, %c0_38, %c0_39], %67 {strides = array<i32>} : memref<2x4x16xf32, #tpu.memory_space<vmem>>, vector<1x4x16xf32>,
    %68 = vector.extract_strided_slice %32 {offsets = [0, 16], sizes = [4, 16], strides = [1, 1]} : vector<4x32xf32> to vector<4x16xf32>
    %c1 = arith.constant 1 : index
    %c0_40 = arith.constant 0 : index
    %c0_41 = arith.constant 0 : index
    %69 = vector.load %arg23[%c1, %c0_40, %c0_41] : memref<2x4x16xf32, #tpu.memory_space<vmem>>, vector<1x4x16xf32>
    %70 = vector.shape_cast %69 : vector<1x4x16xf32> to vector<4x16xf32>
    %71 = vector.shape_cast %68 : vector<4x16xf32> to vector<1x4x16xf32>
    tpu.vector_store %arg23[%c1, %c0_40, %c0_41], %71 {strides = array<i32>} : memref<2x4x16xf32, #tpu.memory_space<vmem>>, vector<1x4x16xf32>,
    %72 = vector.extract_strided_slice %59 {offsets = [0, 16], sizes = [4, 16], strides = [1, 1]} : vector<4x32xf32> to vector<4x16xf32>
    %c1_42 = arith.constant 1 : index
    %c0_43 = arith.constant 0 : index
    %c0_44 = arith.constant 0 : index
    %73 = vector.load %arg24[%c1_42, %c0_43, %c0_44] : memref<2x4x16xf32, #tpu.memory_space<vmem>>, vector<1x4x16xf32>
    %74 = vector.shape_cast %73 : vector<1x4x16xf32> to vector<4x16xf32>
    %75 = vector.shape_cast %72 : vector<4x16xf32> to vector<1x4x16xf32>
    tpu.vector_store %arg24[%c1_42, %c0_43, %c0_44], %75 {strides = array<i32>} : memref<2x4x16xf32, #tpu.memory_space<vmem>>, vector<1x4x16xf32>,
    %c0_45 = arith.constant 0 : index
    %c0_46 = arith.constant 0 : index
    %76 = vector.load %arg10[%c0_45, %c0_46] : memref<8x3xf32, #tpu.memory_space<vmem>>, vector<8x3xf32>
    %c0_47 = arith.constant 0 : index
    %c0_48 = arith.constant 0 : index
    %77 = vector.load %arg12[%c0_47, %c0_48] : memref<3x4xf32, #tpu.memory_space<vmem>>, vector<3x4xf32>
    %cst_49 = arith.constant dense<0.000000e+00> : vector<8x4xf32>
    %78 = tpu.matmul %76, %77, %cst_49 {dimension_numbers = #tpu.dot_dimension_numbers<[1], [0], [0], [1], [0, 0, 1, 1], [], []>} : vector<8x3xf32>, vector<3x4xf32>, vector<8x4xf32> -> vector<8x4xf32>
    %c0_50 = arith.constant 0 : index
    %c0_51 = arith.constant 0 : index
    %79 = vector.load %arg13[%c0_50, %c0_51] : memref<1x4xf32, #tpu.memory_space<vmem>>, vector<1x4xf32>
    %80 = vector.broadcast %79 : vector<1x4xf32> to vector<8x4xf32>
    %81 = arith.addf %78, %80 : vector<8x4xf32>
    %82 = vector.extract_strided_slice %81 {offsets = [0, 3], sizes = [8, 1], strides = [1, 1]} : vector<8x4xf32> to vector<8x1xf32>
    %83 = math.absf %82 : vector<8x1xf32>
    %cst_52 = arith.constant 9.99999974E-5 : f32
    %84 = vector.broadcast %cst_52 : f32 to vector<8x1xf32>
    %85 = arith.cmpf olt, %83, %84 : vector<8x1xf32>
    %cst_53 = arith.constant 0.000000e+00 : f32
    %86 = vector.broadcast %cst_53 : f32 to vector<8x1xf32>
    %87 = arith.cmpf olt, %82, %86 : vector<8x1xf32>
    %cst_54 = arith.constant -9.99999974E-5 : f32
    %cst_55 = arith.constant 9.99999974E-5 : f32
    %88 = vector.broadcast %cst_54 : f32 to vector<8x1xf32>
    %89 = vector.broadcast %cst_55 : f32 to vector<8x1xf32>
    %90 = arith.select %87, %88, %89 : vector<8x1xi1>, vector<8x1xf32>
    %91 = arith.select %85, %90, %82 : vector<8x1xi1>, vector<8x1xf32>
    %92 = vector.extract_strided_slice %81 {offsets = [0, 0], sizes = [8, 1], strides = [1, 1]} : vector<8x4xf32> to vector<8x1xf32>
    %93 = arith.divf %92, %91 : vector<8x1xf32>
    %94 = vector.extract_strided_slice %81 {offsets = [0, 1], sizes = [8, 1], strides = [1, 1]} : vector<8x4xf32> to vector<8x1xf32>
    %95 = arith.divf %94, %91 : vector<8x1xf32>
    %c0_56 = arith.constant 0 : index
    %c0_57 = arith.constant 0 : index
    %96 = vector.load %arg11[%c0_56, %c0_57] : memref<8x2xi32, #tpu.memory_space<vmem>>, vector<8x1xi32>
    %cst_58 = arith.constant 1.000000e+00 : f32
    %97 = vector.broadcast %cst_58 : f32 to vector<8x1xf32>
    %98 = arith.addf %95, %97 : vector<8x1xf32>
    %cst_59 = arith.constant 5.000000e-01 : f32
    %99 = vector.broadcast %cst_59 : f32 to vector<8x1xf32>
    %100 = arith.mulf %98, %99 : vector<8x1xf32>
    %cst_60 = arith.constant 7.000000e+00 : f32
    %101 = vector.broadcast %cst_60 : f32 to vector<8x1xf32>
    %102 = arith.mulf %100, %101 : vector<8x1xf32>
    %cst_61 = arith.constant 5.000000e-01 : f32
    %103 = vector.broadcast %cst_61 : f32 to vector<8x1xf32>
    %104 = arith.addf %102, %103 : vector<8x1xf32>
    %105 = math.floor %104 : vector<8x1xf32>
    %cst_62 = arith.constant 0.000000e+00 : f32
    %c7_i32 = arith.constant 7 : i32
    %106 = vector.broadcast %cst_62 : f32 to vector<8x1xf32>
    %107 = arith.maximumf %106, %105 : vector<8x1xf32>
    %108 = arith.sitofp %c7_i32 : i32 to f32
    %109 = vector.broadcast %108 : f32 to vector<8x1xf32>
    %110 = arith.minimumf %109, %107 : vector<8x1xf32>
    %111 = arith.fptosi %110 : vector<8x1xf32> to vector<8x1xi32>
    %c8_i32 = arith.constant 8 : i32
    %112 = vector.broadcast %c8_i32 : i32 to vector<8x1xi32>
    %113 = arith.muli %111, %112 : vector<8x1xi32>
    %114 = arith.addi %96, %113 : vector<8x1xi32>
    %cst_63 = arith.constant 1.000000e+00 : f32
    %115 = vector.broadcast %cst_63 : f32 to vector<8x1xf32>
    %116 = arith.addf %93, %115 : vector<8x1xf32>
    %cst_64 = arith.constant 5.000000e-01 : f32
    %117 = vector.broadcast %cst_64 : f32 to vector<8x1xf32>
    %118 = arith.mulf %116, %117 : vector<8x1xf32>
    %cst_65 = arith.constant 7.000000e+00 : f32
    %119 = vector.broadcast %cst_65 : f32 to vector<8x1xf32>
    %120 = arith.mulf %118, %119 : vector<8x1xf32>
    %cst_66 = arith.constant 5.000000e-01 : f32
    %121 = vector.broadcast %cst_66 : f32 to vector<8x1xf32>
    %122 = arith.addf %120, %121 : vector<8x1xf32>
    %123 = math.floor %122 : vector<8x1xf32>
    %cst_67 = arith.constant 0.000000e+00 : f32
    %c7_i32_68 = arith.constant 7 : i32
    %124 = vector.broadcast %cst_67 : f32 to vector<8x1xf32>
    %125 = arith.maximumf %124, %123 : vector<8x1xf32>
    %126 = arith.sitofp %c7_i32_68 : i32 to f32
    %127 = vector.broadcast %126 : f32 to vector<8x1xf32>
    %128 = arith.minimumf %127, %125 : vector<8x1xf32>
    %129 = arith.fptosi %128 : vector<8x1xf32> to vector<8x1xi32>
    %130 = arith.addi %114, %129 : vector<8x1xi32>
    %c0_69 = arith.constant 0 : index
    %c1_70 = arith.constant 1 : index
    %131 = vector.load %arg11[%c0_69, %c1_70] : memref<8x2xi32, #tpu.memory_space<vmem>>, vector<8x1xi32>
    %cst_71 = arith.constant 1.000000e+00 : f32
    %132 = vector.broadcast %cst_71 : f32 to vector<8x1xf32>
    %133 = arith.addf %95, %132 : vector<8x1xf32>
    %cst_72 = arith.constant 5.000000e-01 : f32
    %134 = vector.broadcast %cst_72 : f32 to vector<8x1xf32>
    %135 = arith.mulf %133, %134 : vector<8x1xf32>
    %cst_73 = arith.constant 3.000000e+00 : f32
    %136 = vector.broadcast %cst_73 : f32 to vector<8x1xf32>
    %137 = arith.mulf %135, %136 : vector<8x1xf32>
    %cst_74 = arith.constant 5.000000e-01 : f32
    %138 = vector.broadcast %cst_74 : f32 to vector<8x1xf32>
    %139 = arith.addf %137, %138 : vector<8x1xf32>
    %140 = math.floor %139 : vector<8x1xf32>
    %cst_75 = arith.constant 0.000000e+00 : f32
    %c3_i32 = arith.constant 3 : i32
    %141 = vector.broadcast %cst_75 : f32 to vector<8x1xf32>
    %142 = arith.maximumf %141, %140 : vector<8x1xf32>
    %143 = arith.sitofp %c3_i32 : i32 to f32
    %144 = vector.broadcast %143 : f32 to vector<8x1xf32>
    %145 = arith.minimumf %144, %142 : vector<8x1xf32>
    %146 = arith.fptosi %145 : vector<8x1xf32> to vector<8x1xi32>
    %c4_i32 = arith.constant 4 : i32
    %147 = vector.broadcast %c4_i32 : i32 to vector<8x1xi32>
    %148 = arith.muli %146, %147 : vector<8x1xi32>
    %149 = arith.addi %131, %148 : vector<8x1xi32>
    %cst_76 = arith.constant 1.000000e+00 : f32
    %150 = vector.broadcast %cst_76 : f32 to vector<8x1xf32>
    %151 = arith.addf %93, %150 : vector<8x1xf32>
    %cst_77 = arith.constant 5.000000e-01 : f32
    %152 = vector.broadcast %cst_77 : f32 to vector<8x1xf32>
    %153 = arith.mulf %151, %152 : vector<8x1xf32>
    %cst_78 = arith.constant 3.000000e+00 : f32
    %154 = vector.broadcast %cst_78 : f32 to vector<8x1xf32>
    %155 = arith.mulf %153, %154 : vector<8x1xf32>
    %cst_79 = arith.constant 5.000000e-01 : f32
    %156 = vector.broadcast %cst_79 : f32 to vector<8x1xf32>
    %157 = arith.addf %155, %156 : vector<8x1xf32>
    %158 = math.floor %157 : vector<8x1xf32>
    %cst_80 = arith.constant 0.000000e+00 : f32
    %c3_i32_81 = arith.constant 3 : i32
    %159 = vector.broadcast %cst_80 : f32 to vector<8x1xf32>
    %160 = arith.maximumf %159, %158 : vector<8x1xf32>
    %161 = arith.sitofp %c3_i32_81 : i32 to f32
    %162 = vector.broadcast %161 : f32 to vector<8x1xf32>
    %163 = arith.minimumf %162, %160 : vector<8x1xf32>
    %164 = arith.fptosi %163 : vector<8x1xf32> to vector<8x1xi32>
    %165 = arith.addi %149, %164 : vector<8x1xi32>
    %166 = tpu.iota {dimensions = array<i32: 1>} : vector<8x128xi32>
    %167 = vector.broadcast %130 : vector<8x1xi32> to vector<8x128xi32>
    %168 = arith.cmpi eq, %166, %167 : vector<8x128xi32>
    %169 = arith.extui %168 : vector<8x128xi1> to vector<8x128xi32>
    %170 = arith.sitofp %169 : vector<8x128xi32> to vector<8x128xf32>
    %171 = tpu.iota {dimensions = array<i32: 1>} : vector<8x32xi32>
    %172 = vector.broadcast %165 : vector<8x1xi32> to vector<8x32xi32>
    %173 = arith.cmpi eq, %171, %172 : vector<8x32xi32>
    %174 = arith.extui %173 : vector<8x32xi1> to vector<8x32xi32>
    %175 = arith.sitofp %174 : vector<8x32xi32> to vector<8x32xf32>
    %cst_82 = arith.constant dense<0.000000e+00> : vector<8x8xf32>
    %176 = tpu.matmul %170, %7, %cst_82 {dimension_numbers = #tpu.dot_dimension_numbers<[1], [1], [0], [0], [0, 0, 1, 0], [], []>} : vector<8x128xf32>, vector<8x128xf32>, vector<8x8xf32> -> vector<8x8xf32>
    %cst_83 = arith.constant dense<0.000000e+00> : vector<8x16xf32>
    %177 = tpu.matmul %175, %27, %cst_83 {dimension_numbers = #tpu.dot_dimension_numbers<[1], [1], [0], [0], [0, 0, 1, 0], [], []>} : vector<8x32xf32>, vector<16x32xf32>, vector<8x16xf32> -> vector<8x16xf32>
    %cst_84 = arith.constant 0.000000e+00 : f32
    %178 = vector.broadcast %cst_84 : f32 to vector<8x5xf32>
    %179 = tpu.concatenate %176, %177, %76, %178 in 1 : vector<8x8xf32>, vector<8x16xf32>, vector<8x3xf32>, vector<8x5xf32> -> vector<8x32xf32>
    %c0_85 = arith.constant 0 : index
    %c0_86 = arith.constant 0 : index
    %180 = vector.load %arg14[%c0_85, %c0_86] : memref<8x8xf32, #tpu.memory_space<vmem>>, vector<8x8xf32>
    %c0_87 = arith.constant 0 : index
    %c0_88 = arith.constant 0 : index
    %181 = vector.load %arg15[%c0_87, %c0_88] : memref<32x32xf32, #tpu.memory_space<vmem>>, vector<32x32xf32>
    %cst_89 = arith.constant dense<0.000000e+00> : vector<8x32xf32>
    %182 = tpu.matmul %179, %181, %cst_89 {dimension_numbers = #tpu.dot_dimension_numbers<[1], [0], [0], [1], [0, 0, 1, 1], [], []>} : vector<8x32xf32>, vector<32x32xf32>, vector<8x32xf32> -> vector<8x32xf32>
    %c0_90 = arith.constant 0 : index
    %c0_91 = arith.constant 0 : index
    %183 = vector.load %arg16[%c0_90, %c0_91] : memref<1x32xf32, #tpu.memory_space<vmem>>, vector<1x32xf32>
    %184 = vector.broadcast %183 : vector<1x32xf32> to vector<8x32xf32>
    %185 = arith.addf %182, %184 : vector<8x32xf32>
    %cst_92 = arith.constant 0.000000e+00 : f32
    %186 = vector.broadcast %cst_92 : f32 to vector<8x32xf32>
    %187 = arith.maximumf %185, %186 : vector<8x32xf32>
    %cst_93 = arith.constant dense<0.000000e+00> : vector<8x32xf32>
    %188 = tpu.matmul %180, %187, %cst_93 {dimension_numbers = #tpu.dot_dimension_numbers<[1], [0], [0], [1], [0, 0, 1, 1], [], []>} : vector<8x8xf32>, vector<8x32xf32>, vector<8x32xf32> -> vector<8x32xf32>
    %c0_94 = arith.constant 0 : index
    %c0_95 = arith.constant 0 : index
    %189 = vector.load %arg17[%c0_94, %c0_95] : memref<32x32xf32, #tpu.memory_space<vmem>>, vector<32x32xf32>
    %cst_96 = arith.constant dense<0.000000e+00> : vector<8x32xf32>
    %190 = tpu.matmul %187, %189, %cst_96 {dimension_numbers = #tpu.dot_dimension_numbers<[1], [0], [0], [1], [0, 0, 1, 1], [], []>} : vector<8x32xf32>, vector<32x32xf32>, vector<8x32xf32> -> vector<8x32xf32>
    %c0_97 = arith.constant 0 : index
    %c0_98 = arith.constant 0 : index
    %191 = vector.load %arg18[%c0_97, %c0_98] : memref<32x32xf32, #tpu.memory_space<vmem>>, vector<32x32xf32>
    %cst_99 = arith.constant dense<0.000000e+00> : vector<8x32xf32>
    %192 = tpu.matmul %188, %191, %cst_99 {dimension_numbers = #tpu.dot_dimension_numbers<[1], [0], [0], [1], [0, 0, 1, 1], [], []>} : vector<8x32xf32>, vector<32x32xf32>, vector<8x32xf32> -> vector<8x32xf32>
    %193 = arith.addf %190, %192 : vector<8x32xf32>
    %c0_100 = arith.constant 0 : index
    %c0_101 = arith.constant 0 : index
    %194 = vector.load %arg19[%c0_100, %c0_101] : memref<1x32xf32, #tpu.memory_space<vmem>>, vector<1x32xf32>
    %195 = vector.broadcast %194 : vector<1x32xf32> to vector<8x32xf32>
    %196 = arith.addf %193, %195 : vector<8x32xf32>
    %cst_102 = arith.constant 0.000000e+00 : f32
    %197 = vector.broadcast %cst_102 : f32 to vector<8x32xf32>
    %198 = arith.maximumf %196, %197 : vector<8x32xf32>
    %cst_103 = arith.constant dense<0.000000e+00> : vector<8x32xf32>
    %199 = tpu.matmul %180, %198, %cst_103 {dimension_numbers = #tpu.dot_dimension_numbers<[1], [0], [0], [1], [0, 0, 1, 1], [], []>} : vector<8x8xf32>, vector<8x32xf32>, vector<8x32xf32> -> vector<8x32xf32>
    %c0_104 = arith.constant 0 : index
    %c0_105 = arith.constant 0 : index
    %200 = vector.load %arg20[%c0_104, %c0_105] : memref<32x3xf32, #tpu.memory_space<vmem>>, vector<32x3xf32>
    %cst_106 = arith.constant dense<0.000000e+00> : vector<8x3xf32>
    %201 = tpu.matmul %198, %200, %cst_106 {dimension_numbers = #tpu.dot_dimension_numbers<[1], [0], [0], [1], [0, 0, 1, 1], [], []>} : vector<8x32xf32>, vector<32x3xf32>, vector<8x3xf32> -> vector<8x3xf32>
    %c0_107 = arith.constant 0 : index
    %c0_108 = arith.constant 0 : index
    %202 = vector.load %arg21[%c0_107, %c0_108] : memref<32x3xf32, #tpu.memory_space<vmem>>, vector<32x3xf32>
    %cst_109 = arith.constant dense<0.000000e+00> : vector<8x3xf32>
    %203 = tpu.matmul %199, %202, %cst_109 {dimension_numbers = #tpu.dot_dimension_numbers<[1], [0], [0], [1], [0, 0, 1, 1], [], []>} : vector<8x32xf32>, vector<32x3xf32>, vector<8x3xf32> -> vector<8x3xf32>
    %204 = arith.addf %201, %203 : vector<8x3xf32>
    %c0_110 = arith.constant 0 : index
    %c0_111 = arith.constant 0 : index
    %205 = vector.load %arg22[%c0_110, %c0_111] : memref<1x3xf32, #tpu.memory_space<vmem>>, vector<1x3xf32>
    %206 = vector.broadcast %205 : vector<1x3xf32> to vector<8x3xf32>
    %207 = arith.addf %204, %206 : vector<8x3xf32>
    %208 = math.tanh %207 : vector<8x3xf32>
    %209 = arith.addf %76, %208 : vector<8x3xf32>
    %c0_112 = arith.constant 0 : index
    %c0_113 = arith.constant 0 : index
    %210 = vector.load %arg26[%c0_112, %c0_113] : memref<8x3xf32, #tpu.memory_space<vmem>>, vector<8x3xf32>
    tpu.vector_store %arg26[%c0_112, %c0_113], %209 {strides = array<i32>} : memref<8x3xf32, #tpu.memory_space<vmem>>, vector<8x3xf32>,
    return
  }
}

</mosaic_0001>

<llo_original>
// kernel: vox_mesh_head_forward.1
$region0: #{vox_mesh_head_forward.1}
  #allocation0 [shape = 'u32[]', space=smem, size = 0x4, offset = 0x4, fixed_abs, tag = 'smem constant byte address 0x4 - core index']
  #allocation1 [shape = 'u32[72,128]{1,0:T(1,128)}', space=vmem, size = 0x9000, scoped, tag = 'internal scratch']
  %s0 = inlined_call_operand.vmem [shape: f32[32,128], index: 0, kind: input, shape index: {}]
  %s1 = inlined_call_operand.vmem [shape: f32[8,32], index: 1, kind: input, shape index: {}]
  %s2 = inlined_call_operand.vmem [shape: f32[8,1], index: 2, kind: input, shape index: {}]
  %s3 = inlined_call_operand.vmem [shape: bf16[128,288], index: 3, kind: input, shape index: {}]
  %s4 = inlined_call_operand.vmem [shape: f32[16,72], index: 4, kind: input, shape index: {}]
  %s5 = inlined_call_operand.vmem [shape: f32[16,1], index: 5, kind: input, shape index: {}]
  %s6 = inlined_call_operand.vmem [shape: f32[4,16], index: 6, kind: input, shape index: {}]
  %s7 = inlined_call_operand.vmem [shape: f32[4,1], index: 7, kind: input, shape index: {}]
  %s8 = inlined_call_operand.vmem [shape: f32[4,32], index: 8, kind: input, shape index: {}]
  %s9 = inlined_call_operand.vmem [shape: f32[2,32], index: 9, kind: input, shape index: {}]
  %s10 = inlined_call_operand.vmem [shape: f32[8,3], index: 10, kind: input, shape index: {}]
  %s11 = inlined_call_operand.vmem [shape: s32[8,2], index: 11, kind: input, shape index: {}]
  %s12 = inlined_call_operand.vmem [shape: f32[3,4], index: 12, kind: input, shape index: {}]
  %s13 = inlined_call_operand.vmem [shape: f32[1,4], index: 13, kind: input, shape index: {}]
  %s14 = inlined_call_operand.vmem [shape: f32[8,8], index: 14, kind: input, shape index: {}]
  %s15 = inlined_call_operand.vmem [shape: f32[32,32], index: 15, kind: input, shape index: {}]
  %s16 = inlined_call_operand.vmem [shape: f32[1,32], index: 16, kind: input, shape index: {}]
  %s17 = inlined_call_operand.vmem [shape: f32[32,32], index: 17, kind: input, shape index: {}]
  %s18 = inlined_call_operand.vmem [shape: f32[32,32], index: 18, kind: input, shape index: {}]
  %s19 = inlined_call_operand.vmem [shape: f32[1,32], index: 19, kind: input, shape index: {}]
  %s20 = inlined_call_operand.vmem [shape: f32[32,3], index: 20, kind: input, shape index: {}]
  %s21 = inlined_call_operand.vmem [shape: f32[32,3], index: 21, kind: input, shape index: {}]
  %s22 = inlined_call_operand.vmem [shape: f32[1,3], index: 22, kind: input, shape index: {}]
  %s23 = inlined_call_operand.vmem [shape: f32[2,4,16], index: 23, kind: output, shape index: {0}]
  %s24 = inlined_call_operand.vmem [shape: f32[2,4,16], index: 24, kind: output, shape index: {1}]
  %s25 = inlined_call_operand.hbm [shape: s32[1,2], index: 25, kind: output, shape index: {2}]
  %s26 = inlined_call_operand.vmem [shape: f32[8,3], index: 26, kind: output, shape index: {3}]
  %27 = xla_tuple %s23, %s24, %s25, %s26
  %s28 = sld [smem:[#allocation0]]
  $region126: #{vox_mesh_head_forward.1} parent=0
    _
  %s30 = ssub.s32 1, %s28
  %s31 = scalar_select 0, %s30, %s28
  $region1: #{vox_mesh_head_forward.1} parent=0
    #allocation2 [shape = 'u8[512]{0}', space=vmem, size = 0x400, scoped, tag = 'output window, operand 2, single buffered']
    #allocation3 [shape = 's32[1]{0}', space=sflag, size = 0x4, scoped, tag = 'scoped memory for vox_mesh_head_forward.1']
    %32 = vsyncpa [#allocation3], 0
    // Predicated region
    $region2: #{vox_mesh_head_forward.1} parent=1 // pred_check
      _
    $region3: #{vox_mesh_head_forward.1} parent=1 // pred_check_branch
      %34 = sbr.rel (0) target = $region5
    $region4: #{vox_mesh_head_forward.1} parent=1 // pred_region
      _
    $region5: #{vox_mesh_head_forward.1} parent=1 // pred_fallthru
      _
    // Predicated region
    $region6: #{vox_mesh_head_forward.1} parent=1 // pred_check
      _
    $region7: #{vox_mesh_head_forward.1} parent=1 // pred_check_branch
      %36 = sbr.rel (0) target = $region9
    $region8: #{vox_mesh_head_forward.1} parent=1 // pred_region
      _
    $region9: #{vox_mesh_head_forward.1} parent=1 // pred_fallthru
      _
    // Predicated region
    $region10: #{vox_mesh_head_forward.1} parent=1 // pred_check
      _
    $region11: #{vox_mesh_head_forward.1} parent=1 // pred_check_branch
      %38 = sbr.rel (0) target = $region13
    $region12: #{vox_mesh_head_forward.1} parent=1 // pred_region
      _
    $region13: #{vox_mesh_head_forward.1} parent=1 // pred_fallthru
      _
    // Predicated region
    $region14: #{vox_mesh_head_forward.1} parent=1 // pred_check
      _
    $region15: #{vox_mesh_head_forward.1} parent=1 // pred_check_branch
      %40 = sbr.rel (0) target = $region17
    $region16: #{vox_mesh_head_forward.1} parent=1 // pred_region
      _
    $region17: #{vox_mesh_head_forward.1} parent=1 // pred_fallthru
      _
    // Predicated region
    $region18: #{vox_mesh_head_forward.1} parent=1 // pred_check
      _
    $region19: #{vox_mesh_head_forward.1} parent=1 // pred_check_branch
      %42 = sbr.rel (0) target = $region21
    $region20: #{vox_mesh_head_forward.1} parent=1 // pred_region
      _
    $region21: #{vox_mesh_head_forward.1} parent=1 // pred_fallthru
      _
    // Predicated region
    $region22: #{vox_mesh_head_forward.1} parent=1 // pred_check
      _
    $region23: #{vox_mesh_head_forward.1} parent=1 // pred_check_branch
      %44 = sbr.rel (0) target = $region25
    $region24: #{vox_mesh_head_forward.1} parent=1 // pred_region
      _
    $region25: #{vox_mesh_head_forward.1} parent=1 // pred_fallthru
      _
    // Predicated region
    $region26: #{vox_mesh_head_forward.1} parent=1 // pred_check
      _
    $region27: #{vox_mesh_head_forward.1} parent=1 // pred_check_branch
      %46 = sbr.rel (0) target = $region29
    $region28: #{vox_mesh_head_forward.1} parent=1 // pred_region
      _
    $region29: #{vox_mesh_head_forward.1} parent=1 // pred_fallthru
      _
    // Predicated region
    $region30: #{vox_mesh_head_forward.1} parent=1 // pred_check
      _
    $region31: #{vox_mesh_head_forward.1} parent=1 // pred_check_branch
      %48 = sbr.rel (0) target = $region33
    $region32: #{vox_mesh_head_forward.1} parent=1 // pred_region
      _
    $region33: #{vox_mesh_head_forward.1} parent=1 // pred_fallthru
      _
    // Predicated region
    $region34: #{vox_mesh_head_forward.1} parent=1 // pred_check
      _
    $region35: #{vox_mesh_head_forward.1} parent=1 // pred_check_branch
      %50 = sbr.rel (0) target = $region37
    $region36: #{vox_mesh_head_forward.1} parent=1 // pred_region
      _
    $region37: #{vox_mesh_head_forward.1} parent=1 // pred_fallthru
      _
    // Predicated region
    $region38: #{vox_mesh_head_forward.1} parent=1 // pred_check
      _
    $region39: #{vox_mesh_head_forward.1} parent=1 // pred_check_branch
      %52 = sbr.rel (0) target = $region41
    $region40: #{vox_mesh_head_forward.1} parent=1 // pred_region
      _
    $region41: #{vox_mesh_head_forward.1} parent=1 // pred_fallthru
      _
    // Predicated region
    $region42: #{vox_mesh_head_forward.1} parent=1 // pred_check
      _
    $region43: #{vox_mesh_head_forward.1} parent=1 // pred_check_branch
      %54 = sbr.rel (0) target = $region45
    $region44: #{vox_mesh_head_forward.1} parent=1 // pred_region
      _
    $region45: #{vox_mesh_head_forward.1} parent=1 // pred_fallthru
      _
    // Predicated region
    $region46: #{vox_mesh_head_forward.1} parent=1 // pred_check
      _
    $region47: #{vox_mesh_head_forward.1} parent=1 // pred_check_branch
      %56 = sbr.rel (0) target = $region49
    $region48: #{vox_mesh_head_forward.1} parent=1 // pred_region
      _
    $region49: #{vox_mesh_head_forward.1} parent=1 // pred_fallthru
      _
    // Predicated region
    $region50: #{vox_mesh_head_forward.1} parent=1 // pred_check
      _
    $region51: #{vox_mesh_head_forward.1} parent=1 // pred_check_branch
      %58 = sbr.rel (0) target = $region53
    $region52: #{vox_mesh_head_forward.1} parent=1 // pred_region
      _
    $region53: #{vox_mesh_head_forward.1} parent=1 // pred_fallthru
      _
    // Predicated region
    $region54: #{vox_mesh_head_forward.1} parent=1 // pred_check
      _
    $region55: #{vox_mesh_head_forward.1} parent=1 // pred_check_branch
      %60 = sbr.rel (0) target = $region57
    $region56: #{vox_mesh_head_forward.1} parent=1 // pred_region
      _
    $region57: #{vox_mesh_head_forward.1} parent=1 // pred_fallthru
      _
    // Predicated region
    $region58: #{vox_mesh_head_forward.1} parent=1 // pred_check
      _
    $region59: #{vox_mesh_head_forward.1} parent=1 // pred_check_branch
      %62 = sbr.rel (0) target = $region61
    $region60: #{vox_mesh_head_forward.1} parent=1 // pred_region
      _
    $region61: #{vox_mesh_head_forward.1} parent=1 // pred_fallthru
      _
    // Predicated region
    $region62: #{vox_mesh_head_forward.1} parent=1 // pred_check
      _
    $region63: #{vox_mesh_head_forward.1} parent=1 // pred_check_branch
      %64 = sbr.rel (0) target = $region65
    $region64: #{vox_mesh_head_forward.1} parent=1 // pred_region
      _
    $region65: #{vox_mesh_head_forward.1} parent=1 // pred_fallthru
      _
    // Predicated region
    $region66: #{vox_mesh_head_forward.1} parent=1 // pred_check
      _
    $region67: #{vox_mesh_head_forward.1} parent=1 // pred_check_branch
      %66 = sbr.rel (0) target = $region69
    $region68: #{vox_mesh_head_forward.1} parent=1 // pred_region
      _
    $region69: #{vox_mesh_head_forward.1} parent=1 // pred_fallthru
      _
    // Predicated region
    $region70: #{vox_mesh_head_forward.1} parent=1 // pred_check
      _
    $region71: #{vox_mesh_head_forward.1} parent=1 // pred_check_branch
      %68 = sbr.rel (0) target = $region73
    $region72: #{vox_mesh_head_forward.1} parent=1 // pred_region
      _
    $region73: #{vox_mesh_head_forward.1} parent=1 // pred_fallthru
      _
    // Predicated region
    $region74: #{vox_mesh_head_forward.1} parent=1 // pred_check
      _
    $region75: #{vox_mesh_head_forward.1} parent=1 // pred_check_branch
      %70 = sbr.rel (0) target = $region77
    $region76: #{vox_mesh_head_forward.1} parent=1 // pred_region
      _
    $region77: #{vox_mesh_head_forward.1} parent=1 // pred_fallthru
      _
    // Predicated region
    $region78: #{vox_mesh_head_forward.1} parent=1 // pred_check
      _
    $region79: #{vox_mesh_head_forward.1} parent=1 // pred_check_branch
      %72 = sbr.rel (0) target = $region81
    $region80: #{vox_mesh_head_forward.1} parent=1 // pred_region
      _
    $region81: #{vox_mesh_head_forward.1} parent=1 // pred_fallthru
      _
    // Predicated region
    $region82: #{vox_mesh_head_forward.1} parent=1 // pred_check
      _
    $region83: #{vox_mesh_head_forward.1} parent=1 // pred_check_branch
      %74 = sbr.rel (0) target = $region85
    $region84: #{vox_mesh_head_forward.1} parent=1 // pred_region
      _
    $region85: #{vox_mesh_head_forward.1} parent=1 // pred_fallthru
      _
    // Predicated region
    $region86: #{vox_mesh_head_forward.1} parent=1 // pred_check
      _
    $region87: #{vox_mesh_head_forward.1} parent=1 // pred_check_branch
      %76 = sbr.rel (0) target = $region89
    $region88: #{vox_mesh_head_forward.1} parent=1 // pred_region
      _
    $region89: #{vox_mesh_head_forward.1} parent=1 // pred_fallthru
      _
    // Predicated region
    $region90: #{vox_mesh_head_forward.1} parent=1 // pred_check
      _
    $region91: #{vox_mesh_head_forward.1} parent=1 // pred_check_branch
      %78 = sbr.rel (0) target = $region93
    $region92: #{vox_mesh_head_forward.1} parent=1 // pred_region
      _
    $region93: #{vox_mesh_head_forward.1} parent=1 // pred_fallthru
      _
    %v79 = vld [vmem:[%s1] sm:$0xff]
    %v80 = vld [vmem:[%s0] sm:$0xff]
    %v81 = vld [vmem:[%s0 + $0x8] sm:$0xff]
    %v82 = vld [vmem:[%s0 + $0x10] sm:$0xff]
    %v83 = vld [vmem:[%s0 + $0x18] sm:$0xff]
    %v84 = vld [vmem:[%s2] sm:$0xff]
    %86 = vset.pattern.permute.xlu0 0
    %87 = vperm.xlu0 %86, %v84
    %v88 = vpop.permute.xlu0 %87
    %vm90 = vcmask 261120
    %v92 = vsel %vm90, %v79, 0
    %94 = vmatpush.msra.mxu0 0.0
    %95 = vmatpush.msra.mxu0 0.0
    %96 = vmatpush.msra.mxu0 0.0
    %97 = vmatpush.msra.mxu0 0.0
    %98 = vmatpush.msra.mxu0 0.0
    %99 = vmatpush.msra.mxu0 0.0
    %100 = vmatpush.msra.mxu0 0.0
    %101 = vmatpush.msra.mxu0 0.0
    %102 = vmatpush.msra.mxu0 0.0
    %103 = vmatpush.msra.mxu0 0.0
    %104 = vmatpush.msra.mxu0 0.0
    %105 = vmatpush.msra.mxu0 0.0
    %106 = vmatpush.msra.mxu0 %v83
    %107 = vmatpush.msra.mxu0 %v82
    %108 = vmatpush.msra.mxu0 %v81
    %109 = vmatpush.msra.mxu0 %v80
    %110 = vmatmul.f32.gmra.mxu0 %v92
    %v111 = vpop.f32.mrf.mxu0
    %v112 = vadd.f32 %v88, %v111
    %113 = vdwg.mxu0
    %v114 = vmax.f32 %v112, 0.0
    %v115 = vld [vmem:[%s3] sm:$0xff]
    %v116 = vld [vmem:[%s3 + $0x8] sm:$0xf]
    %v117 = vld [vmem:[%s3 + $0xc] sm:$0xff]
    %v118 = vld [vmem:[%s3 + $0x14] sm:$0xf]
    %v119 = vld [vmem:[%s3 + $0x18] sm:$0xff]
    %v120 = vld [vmem:[%s3 + $0x20] sm:$0xf]
    %v121 = vld [vmem:[%s3 + $0x24] sm:$0xff]
    %v122 = vld [vmem:[%s3 + $0x2c] sm:$0xf]
    %v123 = vld [vmem:[%s3 + $0x30] sm:$0xff]
    %v124 = vld [vmem:[%s3 + $0x38] sm:$0xf]
    %v125 = vld [vmem:[%s3 + $0x3c] sm:$0xff]
    %v126 = vld [vmem:[%s3 + $0x44] sm:$0xf]
    %v127 = vld [vmem:[%s3 + $0x48] sm:$0xff]
    %v128 = vld [vmem:[%s3 + $0x50] sm:$0xf]
    %v129 = vld [vmem:[%s3 + $0x54] sm:$0xff]
    %v130 = vld [vmem:[%s3 + $0x5c] sm:$0xf]
    %v131 = vld [vmem:[%s3 + $0x60] sm:$0xff]
    %v132 = vld [vmem:[%s3 + $0x68] sm:$0xf]
    %v133 = vld [vmem:[%s3 + $0x6c] sm:$0xff]
    %v134 = vld [vmem:[%s3 + $0x74] sm:$0xf]
    %v135 = vld [vmem:[%s3 + $0x78] sm:$0xff]
    %v136 = vld [vmem:[%s3 + $0x80] sm:$0xf]
    %v137 = vld [vmem:[%s3 + $0x84] sm:$0xff]
    %v138 = vld [vmem:[%s3 + $0x8c] sm:$0xf]
    %v139 = vld [vmem:[%s3 + $0x90] sm:$0xff]
    %v140 = vld [vmem:[%s3 + $0x98] sm:$0xf]
    %v141 = vld [vmem:[%s3 + $0x9c] sm:$0xff]
    %v142 = vld [vmem:[%s3 + $0xa4] sm:$0xf]
    %v143 = vld [vmem:[%s3 + $0xa8] sm:$0xff]
    %v144 = vld [vmem:[%s3 + $0xb0] sm:$0xf]
    %v145 = vld [vmem:[%s3 + $0xb4] sm:$0xff]
    %v146 = vld [vmem:[%s3 + $0xbc] sm:$0xf]
    %v147 = vunpack.c.l.bf16 %v115
    %v148 = vunpack.c.h.bf16 %v115
    %v149 = vunpack.c.l.bf16 %v116
    %v150 = vunpack.c.l.bf16 %v117
    %v151 = vunpack.c.h.bf16 %v117
    %v152 = vunpack.c.l.bf16 %v118
    %v153 = vunpack.c.l.bf16 %v119
    %v154 = vunpack.c.h.bf16 %v119
    %v155 = vunpack.c.l.bf16 %v120
    %v156 = vunpack.c.l.bf16 %v121
    %v157 = vunpack.c.h.bf16 %v121
    %v158 = vunpack.c.l.bf16 %v122
    %v159 = vunpack.c.l.bf16 %v123
    %v160 = vunpack.c.h.bf16 %v123
    %v161 = vunpack.c.l.bf16 %v124
    %v162 = vunpack.c.l.bf16 %v125
    %v163 = vunpack.c.h.bf16 %v125
    %v164 = vunpack.c.l.bf16 %v126
    %v165 = vunpack.c.l.bf16 %v127
    %v166 = vunpack.c.h.bf16 %v127
    %v167 = vunpack.c.l.bf16 %v128
    %v168 = vunpack.c.l.bf16 %v129
    %v169 = vunpack.c.h.bf16 %v129
    %v170 = vunpack.c.l.bf16 %v130
    %v171 = vunpack.c.l.bf16 %v131
    %v172 = vunpack.c.h.bf16 %v131
    %v173 = vunpack.c.l.bf16 %v132
    %v174 = vunpack.c.l.bf16 %v133
    %v175 = vunpack.c.h.bf16 %v133
    %v176 = vunpack.c.l.bf16 %v134
    %v177 = vunpack.c.l.bf16 %v135
    %v178 = vunpack.c.h.bf16 %v135
    %v179 = vunpack.c.l.bf16 %v136
    %v180 = vunpack.c.l.bf16 %v137
    %v181 = vunpack.c.h.bf16 %v137
    %v182 = vunpack.c.l.bf16 %v138
    %v183 = vunpack.c.l.bf16 %v139
    %v184 = vunpack.c.h.bf16 %v139
    %v185 = vunpack.c.l.bf16 %v140
    %v186 = vunpack.c.l.bf16 %v141
    %v187 = vunpack.c.h.bf16 %v141
    %v188 = vunpack.c.l.bf16 %v142
    %v189 = vunpack.c.l.bf16 %v143
    %v190 = vunpack.c.h.bf16 %v143
    %v191 = vunpack.c.l.bf16 %v144
    %v192 = vunpack.c.l.bf16 %v145
    %v193 = vunpack.c.h.bf16 %v145
    %v194 = vunpack.c.l.bf16 %v146
    %195 = vmatpush.msra.mxu0 %v192
    %196 = vmatpush.msra.mxu0 %v189
    %197 = vmatpush.msra.mxu0 %v186
    %198 = vmatpush.msra.mxu0 %v183
    %199 = vmatpush.msra.mxu0 %v180
    %200 = vmatpush.msra.mxu0 %v177
    %201 = vmatpush.msra.mxu0 %v174
    %202 = vmatpush.msra.mxu0 %v171
    %203 = vmatpush.msra.mxu0 %v168
    %204 = vmatpush.msra.mxu0 %v165
    %205 = vmatpush.msra.mxu0 %v162
    %206 = vmatpush.msra.mxu0 %v159
    %207 = vmatpush.msra.mxu0 %v156
    %208 = vmatpush.msra.mxu0 %v153
    %209 = vmatpush.msra.mxu0 %v150
    %210 = vmatpush.msra.mxu0 %v147
    %211 = vmatmul.f32.gmra.mxu0 %v114
    %v212 = vpop.f32.mrf.mxu0
    %v213 = vadd.f32 0.0, %v212
    %214 = vdwg.mxu0
    %215 = vmatpush.msra.mxu0 %v193
    %216 = vmatpush.msra.mxu0 %v190
    %217 = vmatpush.msra.mxu0 %v187
    %218 = vmatpush.msra.mxu0 %v184
    %219 = vmatpush.msra.mxu0 %v181
    %220 = vmatpush.msra.mxu0 %v178
    %221 = vmatpush.msra.mxu0 %v175
    %222 = vmatpush.msra.mxu0 %v172
    %223 = vmatpush.msra.mxu0 %v169
    %224 = vmatpush.msra.mxu0 %v166
    %225 = vmatpush.msra.mxu0 %v163
    %226 = vmatpush.msra.mxu0 %v160
    %227 = vmatpush.msra.mxu0 %v157
    %228 = vmatpush.msra.mxu0 %v154
    %229 = vmatpush.msra.mxu0 %v151
    %230 = vmatpush.msra.mxu0 %v148
    %231 = vmatmul.f32.gmra.mxu0 %v114
    %v232 = vpop.f32.mrf.mxu0
    %v233 = vadd.f32 0.0, %v232
    %234 = vdwg.mxu0
    %235 = vmatpush.msra.mxu0 %v194
    %236 = vmatpush.msra.mxu0 %v191
    %237 = vmatpush.msra.mxu0 %v188
    %238 = vmatpush.msra.mxu0 %v185
    %239 = vmatpush.msra.mxu0 %v182
    %240 = vmatpush.msra.mxu0 %v179
    %241 = vmatpush.msra.mxu0 %v176
    %242 = vmatpush.msra.mxu0 %v173
    %243 = vmatpush.msra.mxu0 %v170
    %244 = vmatpush.msra.mxu0 %v167
    %245 = vmatpush.msra.mxu0 %v164
    %246 = vmatpush.msra.mxu0 %v161
    %247 = vmatpush.msra.mxu0 %v158
    %248 = vmatpush.msra.mxu0 %v155
    %249 = vmatpush.msra.mxu0 %v152
    %250 = vmatpush.msra.mxu0 %v149
    %251 = vmatmul.f32.gmra.mxu0 %v114
    %v252 = vpop.f32.mrf.mxu0
    %v253 = vadd.f32 0.0, %v252
    %254 = vdwg.mxu0
    %256 = vrot.lane.b32.xlu0 %v213, 96
    %v257 = vpop.permute.xlu0 %256
    %259 = vrot.lane.b32.xlu0 %v213, 64
    %v260 = vpop.permute.xlu0 %259
    %262 = vrot.lane.b32.xlu0 %v213, 32
    %v263 = vpop.permute.xlu0 %262
    %266 = vrot.lane.b32.xlu0 %v233, 96
    %v267 = vpop.permute.xlu0 %266
    %269 = vrot.lane.b32.xlu0 %v233, 64
    %v270 = vpop.permute.xlu0 %269
    %272 = vrot.lane.b32.xlu0 %v233, 32
    %v273 = vpop.permute.xlu0 %272
    %v275 = vld [vmem:[%s4] sm:$0xff]
    %v276 = vld [vmem:[%s4 + $0x8] sm:$0xff]
    %v277 = vld [vmem:[%s5] sm:$0xff]
    %v278 = vld [vmem:[%s5 + $0x8] sm:$0xff]
    %280 = vset.pattern.permute.xlu0 0
    %281 = vperm.xlu0 %280, %v277
    %v282 = vpop.permute.xlu0 %281
    %285 = vset.pattern.permute.xlu0 0
    %286 = vperm.xlu0 %285, %v278
    %v287 = vpop.permute.xlu0 %286
    %vm289 = vcmask 588800
    %v291 = vsel %vm289, %v275, 0
    %v294 = vsel %vm289, %v276, 0
    %296 = vmatpush.msra.mxu0 0.0
    %297 = vmatpush.msra.mxu0 0.0
    %298 = vmatpush.msra.mxu0 0.0
    %299 = vmatpush.msra.mxu0 0.0
    %300 = vmatpush.msra.mxu0 0.0
    %301 = vmatpush.msra.mxu0 0.0
    %302 = vmatpush.msra.mxu0 0.0
    %303 = vmatpush.msra.mxu0 %v253
    %304 = vmatpush.msra.mxu0 %v273
    %305 = vmatpush.msra.mxu0 %v270
    %306 = vmatpush.msra.mxu0 %v267
    %307 = vmatpush.msra.mxu0 %v233
    %308 = vmatpush.msra.mxu0 %v263
    %309 = vmatpush.msra.mxu0 %v260
    %310 = vmatpush.msra.mxu0 %v257
    %311 = vmatpush.msra.mxu0 %v213
    %312 = vmatmul.f32.gmra.mxu0 %v291
    %v313 = vpop.f32.mrf.mxu0
    %v314 = vadd.f32 %v282, %v313
    %315 = vmatmul.f32.gmra.mxu0 %v294
    %v316 = vpop.f32.mrf.mxu0
    %v317 = vadd.f32 %v287, %v316
    %318 = vdwg.mxu0
    %v319 = vmax.f32 %v314, 0.0
    %v320 = vmax.f32 %v317, 0.0
    %v321 = vld [vmem:[%s6] sm:$0xf]
    %v322 = vld [vmem:[%s7] sm:$0xf]
    %324 = vset.pattern.permute.xlu0 0
    %325 = vperm.xlu0 %324, %v322
    %v326 = vpop.permute.xlu0 %325
    %vm328 = vcmask 130048
    %v330 = vsel %vm328, %v321, 0
    %332 = vmatpush.msra.mxu0 0.0
    %333 = vmatpush.msra.mxu0 0.0
    %334 = vmatpush.msra.mxu0 0.0
    %335 = vmatpush.msra.mxu0 0.0
    %336 = vmatpush.msra.mxu0 0.0
    %337 = vmatpush.msra.mxu0 0.0
    %338 = vmatpush.msra.mxu0 0.0
    %339 = vmatpush.msra.mxu0 0.0
    %340 = vmatpush.msra.mxu0 0.0
    %341 = vmatpush.msra.mxu0 0.0
    %342 = vmatpush.msra.mxu0 0.0
    %343 = vmatpush.msra.mxu0 0.0
    %344 = vmatpush.msra.mxu0 0.0
    %345 = vmatpush.msra.mxu0 0.0
    %346 = vmatpush.msra.mxu0 %v320
    %347 = vmatpush.msra.mxu0 %v319
    %348 = vmatmul.f32.gmra.mxu0 %v330
    %v349 = vpop.f32.mrf.mxu0
    %v350 = vadd.f32 %v326, %v349
    %351 = vdwg.mxu0
    %v352 = vxor.u32 %v350, 2147483648
    %v353 = vmul.f32 %v352, 1.442695
    %v354 = vpow.pop %v353
    %v355 = vadd.f32 %v354, 1.0
    %v356 = vrcp.pop %v355
    %v357 = vmul.f32 %v355, %v356
    %v358 = vsub.f32 1.0, %v357
    %v359 = vmul.f32 %v356, %v358
    %v360 = vadd.f32 %v356, %v359
    %vm361 = vweird.f32 %v355
    %vm362 = vweird.f32 %v356
    %vm363 = vmor %vm361, %vm362
    %v364 = vsel %vm363, %v356, %v360
    %v365 = vand.u32 2147483647, %v355
    %vm366 = vcmp.eq.f32.partialorder %v365, 8.507059e+37
    %v367 = vand.u32 %v355, 2147483648
    %v368 = vor.u32 1.1754944e-38, %v367
    %v369 = vsel %vm366, %v368, %v364
    %v370 = vmul.f32 1.0, %v369
    %vm371 = vcmp.gt.f32.partialorder %v370, 0.2
    %v372 = vsel %vm371, 1, 0
    %v373 = vcvt.s32.f32 %v372
    %vm374 = vcmask 257024
    %v375 = vsel %vm374, %v373, 0.0
    %v376 = vrot.slane %v375, 4
    %v377 = vadd.f32 %v375, %v376
    %v378 = vrot.slane %v377, 2
    %v379 = vadd.f32 %v377, %v378
    %v380 = vrot.slane %v379, 1
    %v381 = vadd.f32 %v379, %v380
    %v382 = vld [vmem:[%s9] sm:$0x3]
    %v384 = vsel %vm90, %v381, 0
    %v387 = vsel %vm90, %v382, 0
    %389 = vmatpush.xpose.msra.mxu0 0.0
    %390 = vmatpush.xpose.msra.mxu0 0.0
    %391 = vmatpush.xpose.msra.mxu0 0.0
    %392 = vmatpush.xpose.msra.mxu0 0.0
    %393 = vmatpush.xpose.msra.mxu0 0.0
    %394 = vmatpush.xpose.msra.mxu0 0.0
    %395 = vmatpush.xpose.msra.mxu0 0.0
    %396 = vmatpush.xpose.msra.mxu0 0.0
    %397 = vmatpush.xpose.msra.mxu0 0.0
    %398 = vmatpush.xpose.msra.mxu0 0.0
    %399 = vmatpush.xpose.msra.mxu0 0.0
    %400 = vmatpush.xpose.msra.mxu0 0.0
    %401 = vmatpush.xpose.msra.mxu0 0.0
    %402 = vmatpush.xpose.msra.mxu0 0.0
    %403 = vmatpush.xpose.msra.mxu0 0.0
    %404 = vmatpush.xpose.msra.mxu0 %v387
    %405 = vmatmul.f32.gmra.mxu0 %v384
    %v406 = vpop.f32.mrf.mxu0
    %v407 = vadd.f32 0.0, %v406
    %408 = vdwg.mxu0
    %v409 = vcvt.f32.s32.to.zero.pseudo %v407
    %vm410 = vcmask 8192
    %411 = vst.msk [vmem:[#allocation2] sm:$0x1] %vm410, %v409
    %vm412 = vcmp.eq.f32.partialorder %v407, 0.0
    %v413 = vsel %vm412, 1, 0
    %v414 = vcvt.s32.f32 %v413
    %vm415 = vcmask 15360
    %v417 = vsel %vm415, %v414, 0
    %vm419 = vcmask 1041408
    %v420 = vsel %vm419, %v382, 0
    %422 = vmatpush.msra.mxu0 0.0
    %423 = vmatpush.msra.mxu0 0.0
    %424 = vmatpush.msra.mxu0 0.0
    %425 = vmatpush.msra.mxu0 0.0
    %426 = vmatpush.msra.mxu0 0.0
    %427 = vmatpush.msra.mxu0 0.0
    %428 = vmatpush.msra.mxu0 0.0
    %429 = vmatpush.msra.mxu0 0.0
    %430 = vmatpush.msra.mxu0 0.0
    %431 = vmatpush.msra.mxu0 0.0
    %432 = vmatpush.msra.mxu0 0.0
    %433 = vmatpush.msra.mxu0 0.0
    %434 = vmatpush.msra.mxu0 0.0
    %435 = vmatpush.msra.mxu0 0.0
    %436 = vmatpush.msra.mxu0 0.0
    %437 = vmatpush.msra.mxu0 %v420
    %438 = vmatmul.f32.gmra.mxu0 %v417
    %v439 = vpop.f32.mrf.mxu0
    %v440 = vadd.f32 0.0, %v439
    %441 = vdwg.mxu0
    %v442 = vld [vmem:[%s8] sm:$0xf]
    %v443 = vperm.slane %v440, 0
    %v444 = vmul.f32 %v442, %v443
    %vm445 = vcmp.gt.f32.partialorder %v444, 0.5
    %v446 = vsel %vm445, 1.0, %v370
    %vm447 = vcmask 125952
    %448 = vst.msk [vmem:[%s23] sm:$0xf] %vm447, %v350
    %449 = vst.msk [vmem:[%s24] sm:$0xf] %vm447, %v446
    %451 = vrot.lane.b32.xlu0 %v350, 112
    %v452 = vpop.permute.xlu0 %451
    %s454 = scalar_lea.vmem %s23, 4
    %455 = vst.msk [vmem:[%s454] sm:$0xf] %vm447, %v452
    %457 = vrot.lane.b32.xlu0 %v446, 112
    %v458 = vpop.permute.xlu0 %457
    %s460 = scalar_lea.vmem %s24, 4
    %461 = vst.msk [vmem:[%s460] sm:$0xf] %vm447, %v458
    %v462 = vld [vmem:[%s10] sm:$0xff]
    %v463 = vld [vmem:[%s12] sm:$0x7]
    %v464 = vld [vmem:[%s13] sm:$0x1]
    %v466 = vperm.slane %v464, 0
    %vm468 = vcmask 23552
    %v470 = vsel %vm468, %v462, 0
    %vm472 = vcmask 1042432
    %v474 = vsel %vm472, %v463, 0
    %476 = vmatpush.msra.mxu0 0.0
    %477 = vmatpush.msra.mxu0 0.0
    %478 = vmatpush.msra.mxu0 0.0
    %479 = vmatpush.msra.mxu0 0.0
    %480 = vmatpush.msra.mxu0 0.0
    %481 = vmatpush.msra.mxu0 0.0
    %482 = vmatpush.msra.mxu0 0.0
    %483 = vmatpush.msra.mxu0 0.0
    %484 = vmatpush.msra.mxu0 0.0
    %485 = vmatpush.msra.mxu0 0.0
    %486 = vmatpush.msra.mxu0 0.0
    %487 = vmatpush.msra.mxu0 0.0
    %488 = vmatpush.msra.mxu0 0.0
    %489 = vmatpush.msra.mxu0 0.0
    %490 = vmatpush.msra.mxu0 0.0
    %491 = vmatpush.msra.mxu0 %v474
    %492 = vmatmul.f32.gmra.mxu0 %v470
    %v493 = vpop.f32.mrf.mxu0
    %v494 = vadd.f32 %v466, %v493
    %495 = vdwg.mxu0
    %v496 = vand.u32 2147483647, %v494
    %vm497 = vcmp.lt.f32.partialorder %v496, 0.0001
    %vm498 = vcmp.lt.f32.partialorder %v494, 0.0
    %v499 = vsel %vm498, -0.0001, 0.0001
    %v500 = vsel %vm497, %v499, %v494
    %502 = vrot.lane.b32.xlu0 %v500, 125
    %v503 = vpop.permute.xlu0 %502
    %v505 = vrcp.pop %v503
    %v506 = vmul.f32 %v503, %v505
    %v507 = vsub.f32 1.0, %v506
    %v508 = vmul.f32 %v505, %v507
    %v509 = vadd.f32 %v505, %v508
    %vm510 = vweird.f32 %v503
    %vm511 = vweird.f32 %v505
    %vm512 = vmor %vm510, %vm511
    %v513 = vsel %vm512, %v505, %v509
    %v514 = vand.u32 2147483647, %v503
    %vm515 = vcmp.eq.f32.partialorder %v514, 8.507059e+37
    %v516 = vand.u32 %v503, 2147483648
    %v517 = vor.u32 1.1754944e-38, %v516
    %v518 = vsel %vm515, %v517, %v513
    %v519 = vmul.f32 %v494, %v518
    %520 = vrot.lane.b32.xlu0 %v500, 126
    %v521 = vpop.permute.xlu0 %520
    %v523 = vrcp.pop %v521
    %v524 = vmul.f32 %v521, %v523
    %v525 = vsub.f32 1.0, %v524
    %v526 = vmul.f32 %v523, %v525
    %v527 = vadd.f32 %v523, %v526
    %vm528 = vweird.f32 %v521
    %vm529 = vweird.f32 %v523
    %vm530 = vmor %vm528, %vm529
    %v531 = vsel %vm530, %v523, %v527
    %v532 = vand.u32 2147483647, %v521
    %vm533 = vcmp.eq.f32.partialorder %v532, 8.507059e+37
    %v534 = vand.u32 %v521, 2147483648
    %v535 = vor.u32 1.1754944e-38, %v534
    %v536 = vsel %vm533, %v535, %v531
    %v537 = vmul.f32 %v494, %v536
    %v538 = vld [vmem:[%s11] sm:$0xff]
    %v539 = vadd.f32 %v537, 1.0
    %v540 = vmul.f32 %v539, 0.5
    %v541 = vmul.f32 %v540, 7.0
    %v542 = vadd.f32 %v541, 0.5
    %v543 = vfloor.f32 %v542
    %v544 = vmax.f32 %v543, 0.0
    %v545 = vmin.f32 %v544, 7.0
    %v546 = vcvt.f32.s32.to.zero.pseudo %v545
    %v547 = vmul.u32 %v546, 8
    %548 = vrot.lane.b32.xlu0 %v547, 127
    %v549 = vpop.permute.xlu0 %548
    %v550 = vadd.s32 %v538, %v549
    %v551 = vadd.f32 %v519, 1.0
    %v552 = vmul.f32 %v551, 0.5
    %v553 = vmul.f32 %v552, 7.0
    %v554 = vadd.f32 %v553, 0.5
    %v555 = vfloor.f32 %v554
    %v556 = vmax.f32 %v555, 0.0
    %v557 = vmin.f32 %v556, 7.0
    %v558 = vcvt.f32.s32.to.zero.pseudo %v557
    %v559 = vadd.s32 %v550, %v558
    %v560 = vmul.f32 %v540, 3.0
    %v561 = vadd.f32 %v560, 0.5
    %v562 = vfloor.f32 %v561
    %v563 = vmax.f32 %v562, 0.0
    %v564 = vmin.f32 %v563, 3.0
    %v565 = vcvt.f32.s32.to.zero.pseudo %v564
    %v566 = vmul.u32 %v565, 4
    %v567 = vadd.s32 %v538, %v566
    %v568 = vmul.f32 %v552, 3.0
    %v569 = vadd.f32 %v568, 0.5
    %v570 = vfloor.f32 %v569
    %v571 = vmax.f32 %v570, 0.0
    %v572 = vmin.f32 %v571, 3.0
    %v573 = vcvt.f32.s32.to.zero.pseudo %v572
    %574 = vrot.lane.b32.xlu0 %v573, 1
    %v575 = vpop.permute.xlu0 %574
    %v576 = vadd.s32 %v567, %v575
    %v577 = vlaneseq
    %v578 = vand.u32 %v577, 127
    %579 = vset.pattern.permute.xlu0 0
    %580 = vperm.xlu0 %579, %v559
    %v581 = vpop.permute.xlu0 %580
    %vm582 = vcmp.eq.s32.totalorder %v578, %v581
    %v583 = vsel %vm582, 1, 0
    %v584 = vcvt.s32.f32 %v583
    %585 = vset.pattern.permute.xlu0 1
    %586 = vperm.xlu0 %585, %v576
    %v587 = vpop.permute.xlu0 %586
    %vm588 = vcmp.eq.s32.totalorder %v578, %v587
    %v589 = vsel %vm588, 1, 0
    %v590 = vcvt.s32.f32 %v589
    %591 = vmatpush.xpose.msra.mxu0 0.0
    %592 = vmatpush.xpose.msra.mxu0 0.0
    %593 = vmatpush.xpose.msra.mxu0 0.0
    %594 = vmatpush.xpose.msra.mxu0 0.0
    %595 = vmatpush.xpose.msra.mxu0 0.0
    %596 = vmatpush.xpose.msra.mxu0 0.0
    %597 = vmatpush.xpose.msra.mxu0 0.0
    %598 = vmatpush.xpose.msra.mxu0 0.0
    %599 = vmatpush.xpose.msra.mxu0 0.0
    %600 = vmatpush.xpose.msra.mxu0 0.0
    %601 = vmatpush.xpose.msra.mxu0 0.0
    %602 = vmatpush.xpose.msra.mxu0 0.0
    %603 = vmatpush.xpose.msra.mxu0 0.0
    %604 = vmatpush.xpose.msra.mxu0 0.0
    %605 = vmatpush.xpose.msra.mxu0 0.0
    %606 = vmatpush.xpose.msra.mxu0 %v114
    %607 = vmatmul.f32.gmra.mxu0 %v584
    %v608 = vpop.f32.mrf.mxu0
    %v609 = vadd.f32 0.0, %v608
    %610 = vdwg.mxu0
    %v612 = vsel %vm90, %v590, 0
    %v615 = vsel %vm90, %v319, 0
    %v618 = vsel %vm90, %v320, 0
    %620 = vmatpush.xpose.msra.mxu0 0.0
    %621 = vmatpush.xpose.msra.mxu0 0.0
    %622 = vmatpush.xpose.msra.mxu0 0.0
    %623 = vmatpush.xpose.msra.mxu0 0.0
    %624 = vmatpush.xpose.msra.mxu0 0.0
    %625 = vmatpush.xpose.msra.mxu0 0.0
    %626 = vmatpush.xpose.msra.mxu0 0.0
    %627 = vmatpush.xpose.msra.mxu0 0.0
    %628 = vmatpush.xpose.msra.mxu0 0.0
    %629 = vmatpush.xpose.msra.mxu0 0.0
    %630 = vmatpush.xpose.msra.mxu0 0.0
    %631 = vmatpush.xpose.msra.mxu0 0.0
    %632 = vmatpush.xpose.msra.mxu0 0.0
    %633 = vmatpush.xpose.msra.mxu0 0.0
    %634 = vmatpush.xpose.msra.mxu0 %v618
    %635 = vmatpush.xpose.msra.mxu0 %v615
    %636 = vmatmul.f32.gmra.mxu0 %v612
    %v637 = vpop.f32.mrf.mxu0
    %v638 = vadd.f32 0.0, %v637
    %639 = vdwg.mxu0
    %641 = vrot.lane.b32.xlu0 %v638, 8
    %v642 = vpop.permute.xlu0 %641
    %644 = vrot.lane.b32.xlu0 %v462, 24
    %v645 = vpop.permute.xlu0 %644
    %vm647 = vcmask 64512
    %v648 = vsel %vm647, %v609, %v642
    %vm649 = vcmask 195584
    %v650 = vsel %vm649, %v648, %v645
    %vm651 = vcmask 220160
    %v652 = vsel %vm651, %v650, 0.0
    %v653 = vld [vmem:[%s14] sm:$0xff]
    %v654 = vld [vmem:[%s15] sm:$0xff]
    %v655 = vld [vmem:[%s15 + $0x8] sm:$0xff]
    %v656 = vld [vmem:[%s15 + $0x10] sm:$0xff]
    %v657 = vld [vmem:[%s15 + $0x18] sm:$0xff]
    %v658 = vld [vmem:[%s16] sm:$0x1]
    %v660 = vperm.slane %v658, 0
    %v663 = vsel %vm90, %v652, 0
    %665 = vmatpush.msra.mxu0 0.0
    %666 = vmatpush.msra.mxu0 0.0
    %667 = vmatpush.msra.mxu0 0.0
    %668 = vmatpush.msra.mxu0 0.0
    %669 = vmatpush.msra.mxu0 0.0
    %670 = vmatpush.msra.mxu0 0.0
    %671 = vmatpush.msra.mxu0 0.0
    %672 = vmatpush.msra.mxu0 0.0
    %673 = vmatpush.msra.mxu0 0.0
    %674 = vmatpush.msra.mxu0 0.0
    %675 = vmatpush.msra.mxu0 0.0
    %676 = vmatpush.msra.mxu0 0.0
    %677 = vmatpush.msra.mxu0 %v657
    %678 = vmatpush.msra.mxu0 %v656
    %679 = vmatpush.msra.mxu0 %v655
    %680 = vmatpush.msra.mxu0 %v654
    %681 = vmatmul.f32.gmra.mxu0 %v663
    %v682 = vpop.f32.mrf.mxu0
    %v683 = vadd.f32 %v660, %v682
    %684 = vdwg.mxu0
    %v685 = vmax.f32 %v683, 0.0
    %v687 = vsel %vm647, %v653, 0
    %689 = vmatpush.msra.mxu0 0.0
    %690 = vmatpush.msra.mxu0 0.0
    %691 = vmatpush.msra.mxu0 0.0
    %692 = vmatpush.msra.mxu0 0.0
    %693 = vmatpush.msra.mxu0 0.0
    %694 = vmatpush.msra.mxu0 0.0
    %695 = vmatpush.msra.mxu0 0.0
    %696 = vmatpush.msra.mxu0 0.0
    %697 = vmatpush.msra.mxu0 0.0
    %698 = vmatpush.msra.mxu0 0.0
    %699 = vmatpush.msra.mxu0 0.0
    %700 = vmatpush.msra.mxu0 0.0
    %701 = vmatpush.msra.mxu0 0.0
    %702 = vmatpush.msra.mxu0 0.0
    %703 = vmatpush.msra.mxu0 0.0
    %704 = vmatpush.msra.mxu0 %v685
    %705 = vmatmul.f32.gmra.mxu0 %v687
    %v706 = vpop.f32.mrf.mxu0
    %v707 = vadd.f32 0.0, %v706
    %708 = vdwg.mxu0
    %v709 = vld [vmem:[%s17] sm:$0xff]
    %v710 = vld [vmem:[%s17 + $0x8] sm:$0xff]
    %v711 = vld [vmem:[%s17 + $0x10] sm:$0xff]
    %v712 = vld [vmem:[%s17 + $0x18] sm:$0xff]
    %v713 = vld [vmem:[%s18] sm:$0xff]
    %v714 = vld [vmem:[%s18 + $0x8] sm:$0xff]
    %v715 = vld [vmem:[%s18 + $0x10] sm:$0xff]
    %v716 = vld [vmem:[%s18 + $0x18] sm:$0xff]
    %v718 = vsel %vm90, %v707, 0
    %720 = vmatpush.msra.mxu0 0.0
    %721 = vmatpush.msra.mxu0 0.0
    %722 = vmatpush.msra.mxu0 0.0
    %723 = vmatpush.msra.mxu0 0.0
    %724 = vmatpush.msra.mxu0 0.0
    %725 = vmatpush.msra.mxu0 0.0
    %726 = vmatpush.msra.mxu0 0.0
    %727 = vmatpush.msra.mxu0 0.0
    %728 = vmatpush.msra.mxu0 0.0
    %729 = vmatpush.msra.mxu0 0.0
    %730 = vmatpush.msra.mxu0 0.0
    %731 = vmatpush.msra.mxu0 0.0
    %732 = vmatpush.msra.mxu0 %v716
    %733 = vmatpush.msra.mxu0 %v715
    %734 = vmatpush.msra.mxu0 %v714
    %735 = vmatpush.msra.mxu0 %v713
    %736 = vmatmul.f32.gmra.mxu0 %v718
    %v737 = vpop.f32.mrf.mxu0
    %v738 = vadd.f32 0.0, %v737
    %739 = vdwg.mxu0
    %v741 = vsel %vm90, %v685, 0
    %743 = vmatpush.msra.mxu0 0.0
    %744 = vmatpush.msra.mxu0 0.0
    %745 = vmatpush.msra.mxu0 0.0
    %746 = vmatpush.msra.mxu0 0.0
    %747 = vmatpush.msra.mxu0 0.0
    %748 = vmatpush.msra.mxu0 0.0
    %749 = vmatpush.msra.mxu0 0.0
    %750 = vmatpush.msra.mxu0 0.0
    %751 = vmatpush.msra.mxu0 0.0
    %752 = vmatpush.msra.mxu0 0.0
    %753 = vmatpush.msra.mxu0 0.0
    %754 = vmatpush.msra.mxu0 0.0
    %755 = vmatpush.msra.mxu0 %v712
    %756 = vmatpush.msra.mxu0 %v711
    %757 = vmatpush.msra.mxu0 %v710
    %758 = vmatpush.msra.mxu0 %v709
    %759 = vmatmul.f32.gmra.mxu0 %v741
    %v760 = vpop.f32.mrf.mxu0
    %v761 = vadd.f32 %v738, %v760
    %762 = vdwg.mxu0
    %v763 = vld [vmem:[%s19] sm:$0x1]
    %v765 = vperm.slane %v763, 0
    %v767 = vadd.f32 %v761, %v765
    %v768 = vmax.f32 %v767, 0.0
    %769 = vmatpush.msra.mxu0 0.0
    %770 = vmatpush.msra.mxu0 0.0
    %771 = vmatpush.msra.mxu0 0.0
    %772 = vmatpush.msra.mxu0 0.0
    %773 = vmatpush.msra.mxu0 0.0
    %774 = vmatpush.msra.mxu0 0.0
    %775 = vmatpush.msra.mxu0 0.0
    %776 = vmatpush.msra.mxu0 0.0
    %777 = vmatpush.msra.mxu0 0.0
    %778 = vmatpush.msra.mxu0 0.0
    %779 = vmatpush.msra.mxu0 0.0
    %780 = vmatpush.msra.mxu0 0.0
    %781 = vmatpush.msra.mxu0 0.0
    %782 = vmatpush.msra.mxu0 0.0
    %783 = vmatpush.msra.mxu0 0.0
    %784 = vmatpush.msra.mxu0 %v768
    %785 = vmatmul.f32.gmra.mxu0 %v687
    %v786 = vpop.f32.mrf.mxu0
    %v787 = vadd.f32 0.0, %v786
    %788 = vdwg.mxu0
    %v789 = vld [vmem:[%s20] sm:$0xff]
    %v790 = vld [vmem:[%s20 + $0x8] sm:$0xff]
    %v791 = vld [vmem:[%s20 + $0x10] sm:$0xff]
    %v792 = vld [vmem:[%s20 + $0x18] sm:$0xff]
    %v793 = vld [vmem:[%s21] sm:$0xff]
    %v794 = vld [vmem:[%s21 + $0x8] sm:$0xff]
    %v795 = vld [vmem:[%s21 + $0x10] sm:$0xff]
    %v796 = vld [vmem:[%s21 + $0x18] sm:$0xff]
    %v798 = vsel %vm90, %v787, 0
    %800 = vmatpush.msra.mxu0 0.0
    %801 = vmatpush.msra.mxu0 0.0
    %802 = vmatpush.msra.mxu0 0.0
    %803 = vmatpush.msra.mxu0 0.0
    %804 = vmatpush.msra.mxu0 0.0
    %805 = vmatpush.msra.mxu0 0.0
    %806 = vmatpush.msra.mxu0 0.0
    %807 = vmatpush.msra.mxu0 0.0
    %808 = vmatpush.msra.mxu0 0.0
    %809 = vmatpush.msra.mxu0 0.0
    %810 = vmatpush.msra.mxu0 0.0
    %811 = vmatpush.msra.mxu0 0.0
    %812 = vmatpush.msra.mxu0 %v796
    %813 = vmatpush.msra.mxu0 %v795
    %814 = vmatpush.msra.mxu0 %v794
    %815 = vmatpush.msra.mxu0 %v793
    %816 = vmatmul.f32.gmra.mxu0 %v798
    %v817 = vpop.f32.mrf.mxu0
    %v818 = vadd.f32 0.0, %v817
    %819 = vdwg.mxu0
    %v821 = vsel %vm90, %v768, 0
    %823 = vmatpush.msra.mxu0 0.0
    %824 = vmatpush.msra.mxu0 0.0
    %825 = vmatpush.msra.mxu0 0.0
    %826 = vmatpush.msra.mxu0 0.0
    %827 = vmatpush.msra.mxu0 0.0
    %828 = vmatpush.msra.mxu0 0.0
    %829 = vmatpush.msra.mxu0 0.0
    %830 = vmatpush.msra.mxu0 0.0
    %831 = vmatpush.msra.mxu0 0.0
    %832 = vmatpush.msra.mxu0 0.0
    %833 = vmatpush.msra.mxu0 0.0
    %834 = vmatpush.msra.mxu0 0.0
    %835 = vmatpush.msra.mxu0 %v792
    %836 = vmatpush.msra.mxu0 %v791
    %837 = vmatpush.msra.mxu0 %v790
    %838 = vmatpush.msra.mxu0 %v789
    %839 = vmatmul.f32.gmra.mxu0 %v821
    %v840 = vpop.f32.mrf.mxu0
    %v841 = vadd.f32 %v818, %v840
    %842 = vdwg.mxu0
    %v843 = vld [vmem:[%s22] sm:$0x1]
    %v845 = vperm.slane %v843, 0
    %v847 = vadd.f32 %v841, %v845
    %v848 = vtanh.pop %v847
    %v849 = vadd.f32 %v462, %v848
    %850 = vst.msk [vmem:[%s26] sm:$0xff] %vm468, %v849
    // Predicated region
    $region94: #{vox_mesh_head_forward.1} parent=1 // pred_check
      _
    $region95: #{vox_mesh_head_forward.1} parent=1 // pred_check_branch
      %852 = sbr.rel (0) target = $region97
    $region96: #{vox_mesh_head_forward.1} parent=1 // pred_region
      _
    $region97: #{vox_mesh_head_forward.1} parent=1 // pred_fallthru
      _
    // Predicated region
    $region98: #{vox_mesh_head_forward.1} parent=1 // pred_check
      _
    $region99: #{vox_mesh_head_forward.1} parent=1 // pred_check_branch
      %854 = sbr.rel (0) target = $region101
    $region100: #{vox_mesh_head_forward.1} parent=1 // pred_region
      _
    $region101: #{vox_mesh_head_forward.1} parent=1 // pred_fallthru
      _
    // Predicated region
    $region102: #{vox_mesh_head_forward.1} parent=1 // pred_check
      _
    $region103: #{vox_mesh_head_forward.1} parent=1 // pred_check_branch
      %856 = sbr.rel (0) target = $region105
    $region104: #{vox_mesh_head_forward.1} parent=1 // pred_region
      %858 = vsyncadd [#allocation3], 0
      %s860 = sshll.u32 [#allocation2], 4
      %s861 = int_to_ptr.vmem [resolvable:$true] %s860
      %s862 = sshll.u32 %s25, 4
      %s863 = int_to_ptr.hbm [resolvable:$true] %s862
      %865 = dma.vmem_to_hbm [thread:$0]  %s861, 16, %s863, [#allocation3]
    $region105: #{vox_mesh_head_forward.1} parent=1 // pred_fallthru
      _
    // Predicated region
    $region106: #{vox_mesh_head_forward.1} parent=1 // pred_check
      _
    $region107: #{vox_mesh_head_forward.1} parent=1 // pred_check_branch
      %867 = sbr.rel (0) target = $region109
    $region108: #{vox_mesh_head_forward.1} parent=1 // pred_region
      _
    $region109: #{vox_mesh_head_forward.1} parent=1 // pred_fallthru
      _
    // Predicated region
    $region110: #{vox_mesh_head_forward.1} parent=1 // pred_check
      _
    $region111: #{vox_mesh_head_forward.1} parent=1 // pred_check_branch
      %869 = sbr.rel (0) target = $region113
    $region112: #{vox_mesh_head_forward.1} parent=1 // pred_region
      _
    $region113: #{vox_mesh_head_forward.1} parent=1 // pred_fallthru
      _
    // Predicated region
    $region114: #{vox_mesh_head_forward.1} parent=1 // pred_check
      _
    $region115: #{vox_mesh_head_forward.1} parent=1 // pred_check_branch
      %871 = sbr.rel (0) target = $region117
    $region116: #{vox_mesh_head_forward.1} parent=1 // pred_region
      _
    $region117: #{vox_mesh_head_forward.1} parent=1 // pred_fallthru
      _
    // Predicated region
    $region118: #{vox_mesh_head_forward.1} parent=1 // pred_check
      _
    $region119: #{vox_mesh_head_forward.1} parent=1 // pred_check_branch
      %873 = sbr.rel (0) target = $region121
    $region120: #{vox_mesh_head_forward.1} parent=1 // pred_region
      %875 = dma.done [#allocation3], 16
    $region121: #{vox_mesh_head_forward.1} parent=1 // pred_fallthru
      _
    // Predicated region
    $region122: #{vox_mesh_head_forward.1} parent=1 // pred_check
      _
    $region123: #{vox_mesh_head_forward.1} parent=1 // pred_check_branch
      %877 = sbr.rel (0) target = $region125
    $region124: #{vox_mesh_head_forward.1} parent=1 // pred_region
      _
    $region125: #{vox_mesh_head_forward.1} parent=1 // pred_fallthru
      _
    %878 = vsyncpa [#allocation3], 1

</llo_original>
